<compile_context>
chip_gen: v7x
topology: tpu7x:2x2x1
jax: 0.10.0
libtpu: 0.0.40
codegen_flags: <defaults>
</compile_context>

<pallas_src>
import math

import jax
import jax.numpy as jnp
import numpy as np
from jax.experimental import pallas as pl
from jax.experimental.pallas import tpu as pltpu

K = 5               # ConvTranspose1d kernel size (fixed by the module)
PADDING = 2         # ConvTranspose1d padding
OUTPUT_PADDING = 1  # ConvTranspose1d output_padding
BN_EPS = 1e-5


# ---------------- static (trace-time) helpers ----------------

def _phase_taps(s):
    """Per output phase p (t = s*j + p), the (d, k) pairs with tap k = s*d + p + PADDING
    applied to input sample i = j - d.  ConvTranspose1d == sum of these contributions."""
    taps = []
    for p in range(s):
        d_lo = -((p + PADDING) // s)                 # ceil(-(p+PADDING)/s)
        d_hi = (K - 1 - p - PADDING) // s            # floor((K-1-p-PADDING)/s)
        taps.append([(d, s * d + p + PADDING) for d in range(d_lo, d_hi + 1)])
    return taps


def _choose_tile(l_out, s, max_tl):
    """Return (TJ, TL, num_lt): phase-space tile size, stored tile width, #L tiles.
    Guarantees the y/out block lane width TL is either == L_out or a multiple of 128,
    and TL <= L_out (so blocks never exceed the array)."""
    base = 128 * s // math.gcd(s, 128)               # smallest TL that is a multiple of 128 and s
    if l_out > max_tl and base <= l_out:
        tl = base * max(1, max_tl // base)
        return tl // s, tl, -(-l_out // tl)
    # single tile: compute s*ceil(L_out/s) columns, store the first L_out of them
    return -(-l_out // s), l_out, 1


# ---------------- Pallas kernels ----------------

def _make_conv_stats_kernel(s, taps, d_max, tj, tl, l_out):
    """Fused polyphase ConvTranspose1d + bias + per-channel batch-stat partials."""

    def kernel(xw_ref, w_ref, b_ref, y_ref, ps_ref, pq_ref):
        # xw_ref: (1, 1, C_in, W_len) halo'd input window (channels-first)
        # w_ref : (K, C_out, C_in)    weight[c, o, k] transposed to (k, o, c)
        # b_ref : (C_out, 1)
        # y_ref : (1, C_out, TL)      conv output tile (lane-dense along time)
        # ps/pq : (1, 1, C_out, 1)    per-tile partial sum / sum-of-squares
        l = pl.program_id(1)
        c_out = w_ref.shape[1]

        phase_acc = []
        for p in range(s):
            acc = None
            for (d, k) in taps[p]:
                st = d_max - d                       # static slice into the halo window
                contrib = jnp.dot(w_ref[k], xw_ref[0, 0, :, st:st + tj],
                                  preferred_element_type=jnp.float32)
                acc = contrib if acc is None else acc + contrib
            if acc is None:                          # phase with no taps (only if s > K)
                acc = jnp.zeros((c_out, tj), jnp.float32)
            phase_acc.append(acc)

        if s == 1:
            y_tile = phase_acc[0]
        else:
            # interleave phases along time: column s*jj + p <- phase p, position jj
            y_tile = jnp.stack(phase_acc, axis=-1).reshape(c_out, s * tj)
        if s * tj != tl:                             # single-tile case with s not dividing L_out
            y_tile = y_tile[:, :tl]
        y_tile = y_tile + b_ref[...]                 # (C_out, 1) bias broadcast over lanes

        # BatchNorm batch statistics, restricted to valid columns (t < L_out).
        col = jax.lax.broadcasted_iota(jnp.int32, (1, tl), 1) + l * tl
        mask = (col < l_out).astype(jnp.float32)
        yv = y_tile * mask
        ps_ref[0, 0, :, :] = jnp.sum(yv, axis=1, keepdims=True)
        pq_ref[0, 0, :, :] = jnp.sum(yv * y_tile, axis=1, keepdims=True)

        y_ref[0, :, :] = y_tile.astype(y_ref.dtype)

    return kernel


def _bn_relu_kernel(y_ref, scale_ref, shift_ref, o_ref):
    # o = relu(y * scale + shift); scale/shift are (C_out, 1) and fold mean/var/gamma/beta.
    y = y_ref[0, :, :].astype(jnp.float32)
    o_ref[0, :, :] = jnp.maximum(y * scale_ref[...] + shift_ref[...],
                                 0.0).astype(o_ref.dtype)


# ---------------- wrapper ----------------

def speech_feat_upsample2(x, weight, bias, gamma, beta, upsample,
                          eps=BN_EPS, compute_dtype=jnp.bfloat16, max_tl=512):
    """Forward pass of SpeechFeatUpsample2.

    x:      (N, C_in, L_in)   PyTorch NCL layout
    weight: (C_in, C_out, K)  PyTorch ConvTranspose1d weight layout
    bias/gamma/beta: (C_out,)
    Returns (N, C_out, L_out) in x.dtype.  compute_dtype controls the precision of the
    conv inputs/weights and the y intermediate (accumulation is always float32).
    """
    N, C_in, L_in = x.shape
    C_out = weight.shape[1]
    s = int(upsample)
    if L_in < 2 or s < 1:
        raise ValueError("need L_in >= 2 and upsample >= 1")
    L_out = (L_in - 1) * s - 2 * PADDING + K + OUTPUT_PADDING

    taps = _phase_taps(s)
    all_d = [d for per_p in taps for (d, _) in per_p]
    d_min, d_max = min(all_d), max(all_d)
    halo = d_max - d_min

    TJ, TL, num_lt = _choose_tile(L_out, s, max_tl)
    W_len = TJ + halo

    # ---- glue: overlapped, zero-padded input windows (halo'd L-tiling, ~1x input copy) ----
    left = max(d_max, 0)
    off0 = left - d_max                                   # >= 0
    need = off0 + num_lt * TJ + halo
    right = max(0, need - (left + L_in))
    xp = jnp.pad(x.astype(compute_dtype), ((0, 0), (0, 0), (left, right)))
    x_win = jnp.stack(
        [jax.lax.slice_in_dim(xp, off0 + l * TJ, off0 + l * TJ + W_len, axis=2)
         for l in range(num_lt)], axis=0)                 # (num_lt, N, C_in, W_len)

    w_t = jnp.transpose(weight, (2, 1, 0)).astype(compute_dtype)   # (K, C_out, C_in)
    b2 = bias.reshape(C_out, 1).astype(jnp.float32)

    # Scoped-VMEM budget: double-buffered blocks of the conv call, with 2x headroom.
    csz = np.dtype(compute_dtype).itemsize
    est = 2 * (C_in * W_len * csz + K * C_out * C_in * csz + C_out * TL * csz
               + C_out * 16)
    vmem_limit = int(min(56 * 2**20, max(16 * 2**20, 2 * est)))

    # ---- 1) fused polyphase ConvTranspose1d + bias + BN-stat partials ----
    conv_kernel = _make_conv_stats_kernel(s, taps, d_max, TJ, TL, L_out)
    y, psum, psq = pl.pallas_call(
        conv_kernel,
        out_shape=(jax.ShapeDtypeStruct((N, C_out, L_out), compute_dtype),
                   jax.ShapeDtypeStruct((N, num_lt, C_out, 1), jnp.float32),
                   jax.ShapeDtypeStruct((N, num_lt, C_out, 1), jnp.float32)),
        grid=(N, num_lt),
        in_specs=[pl.BlockSpec((1, 1, C_in, W_len), lambda n, l: (l, n, 0, 0)),
                  pl.BlockSpec((K, C_out, C_in), lambda n, l: (0, 0, 0)),
                  pl.BlockSpec((C_out, 1), lambda n, l: (0, 0))],
        out_specs=(pl.BlockSpec((1, C_out, TL), lambda n, l: (n, 0, l)),
                   pl.BlockSpec((1, 1, C_out, 1), lambda n, l: (n, l, 0, 0)),
                   pl.BlockSpec((1, 1, C_out, 1), lambda n, l: (n, l, 0, 0))),
        compiler_params=pltpu.CompilerParams(
            dimension_semantics=("parallel", "parallel"),
            vmem_limit_bytes=vmem_limit),
    )(x_win, w_t, b2)

    # ---- 2) BatchNorm1d training-mode statistics (biased variance) — tiny XLA ops ----
    cnt = float(N * L_out)
    sums = jnp.sum(psum, axis=(0, 1))                     # (C_out, 1)
    sqs = jnp.sum(psq, axis=(0, 1))
    mean = sums / cnt
    var = jnp.maximum(sqs / cnt - mean * mean, 0.0)
    inv_std = jax.lax.rsqrt(var + eps)
    g2 = gamma.reshape(C_out, 1).astype(jnp.float32)
    bt2 = beta.reshape(C_out, 1).astype(jnp.float32)

    # BatchNorm1D wrapper skips BN entirely when the conv output contains any NaN.
    # NaN in y propagates into the channel sums we already have, so no extra pass over y.
    has_nan = jnp.any(jnp.isnan(sums))
    scale = jnp.where(has_nan, jnp.ones_like(g2), g2 * inv_std)
    shift = jnp.where(has_nan, jnp.zeros_like(bt2), bt2 - mean * g2 * inv_std)

    # ---- 3) normalize + ReLU (already channels-first -> no trailing transpose) ----
    out_dtype = x.dtype if jnp.issubdtype(x.dtype, jnp.floating) else jnp.float32
    out = pl.pallas_call(
        _bn_relu_kernel,
        out_shape=jax.ShapeDtypeStruct((N, C_out, L_out), out_dtype),
        grid=(N, num_lt),
        in_specs=[pl.BlockSpec((1, C_out, TL), lambda n, l: (n, 0, l)),
                  pl.BlockSpec((C_out, 1), lambda n, l: (0, 0)),
                  pl.BlockSpec((C_out, 1), lambda n, l: (0, 0))],
        out_specs=pl.BlockSpec((1, C_out, TL), lambda n, l: (n, 0, l)),
        compiler_params=pltpu.CompilerParams(
            dimension_semantics=("parallel", "parallel"),
            vmem_limit_bytes=vmem_limit),
    )(y, scale, shift)
    return out


# ---------------- pure-JAX reference (zero-insertion formulation, float32) ----------------

def reference(x, weight, bias, gamma, beta, upsample, eps=BN_EPS):
    N, C_in, L_in = x.shape
    s = int(upsample)
    L_out = (L_in - 1) * s - 2 * PADDING + K + OUTPUT_PADDING
    x_nlc = jnp.transpose(x, (0, 2, 1)).astype(jnp.float32)
    L_up = (L_in - 1) * s + 1
    x_up = jnp.zeros((N, L_up, C_in), jnp.float32).at[:, ::s, :].set(x_nlc)
    xpad = jnp.pad(x_up, ((0, 0),
                          (K - 1 - PADDING, K - 1 - PADDING + OUTPUT_PADDING),
                          (0, 0)))
    wf = jnp.flip(weight, axis=2).transpose(2, 0, 1)
    y = sum(jnp.einsum('nti,io->nto', xpad[:, k:k + L_out, :], wf[k])
            for k in range(K)) + bias[None, None, :]
    mean = jnp.mean(y, axis=(0, 1))
    var = jnp.mean((y - mean[None, None, :]) ** 2, axis=(0, 1))
    yn = (y - mean) * jax.lax.rsqrt(var + eps) * gamma + beta
    return jnp.maximum(jnp.transpose(yn, (0, 2, 1)), 0.0)


if __name__ == "__main__":
    key = jax.random.PRNGKey(0)

    def make_inputs(k, N, C_in, C_out, L_in):
        k1, k2, k3, k4, k5 = jax.random.split(k, 5)
        x = jax.random.normal(k1, (N, C_in, L_in), jnp.float32)
        bound = (1.0 / (C_in * K)) ** 0.5
        w = jax.random.uniform(k2, (C_in, C_out, K), jnp.float32, -bound, bound)
        b = jax.random.uniform(k3, (C_out,), jnp.float32, -bound, bound)
        g = jax.random.uniform(k4, (C_out,), jnp.float32, 0.5, 1.5)
        bt = 0.1 * jax.random.normal(k5, (C_out,), jnp.float32)
        return x, w, b, g, bt

    cases = [
        # (N, model_dim, speaker_embed_dim, L_in, upsample, max_tl, compute_dtype, rtol, atol)
        (2, 32, 16, 8, 2, 512, jnp.float32, 1e-4, 1e-4),   # module-like small case, exact f32 path
        (2, 32, 16, 8, 2, 512, jnp.bfloat16, 5e-2, 5e-2),  # default bf16 fast path
        (2, 32, 16, 96, 2, 128, jnp.float32, 1e-4, 1e-4),  # multi L-tile with masked partial tile
        (1, 16, 16, 20, 3, 512, jnp.float32, 1e-4, 1e-4),  # stride-3 polyphase, uneven phases
    ]
    for idx, (N, C_in, C_out, L_in, up, mtl, cdt, rtol, atol) in enumerate(cases):
        key, sub = jax.random.split(key)
        x, w, b, g, bt = make_inputs(sub, N, C_in, C_out, L_in)
        out = speech_feat_upsample2(x, w, b, g, bt, up,
                                    compute_dtype=cdt, max_tl=mtl)
        out = jax.block_until_ready(out)
        L_out = (L_in - 1) * up - 2 * PADDING + K + OUTPUT_PADDING
        assert out.shape == (N, C_out, L_out), (idx, out.shape)
        ref = reference(x, w, b, g, bt, up)
        np.testing.assert_allclose(np.asarray(out), np.asarray(ref),
                                   rtol=rtol, atol=atol, err_msg=f"case {idx}")

    print("KERNEL_OK")
</pallas_src>

<mosaic_0001>
module attributes {stable_mosaic.version = 11 : i64} {
  func.func @kernel(%arg0: i32, %arg1: i32, %arg2: memref<1x1x32x10xf32, #tpu.memory_space<vmem>>, %arg3: memref<5x16x32xf32, #tpu.memory_space<vmem>>, %arg4: memref<16x1xf32, #tpu.memory_space<vmem>>, %arg5: memref<1x16x16xf32, #tpu.memory_space<vmem>>, %arg6: memref<1x1x16x1xf32, #tpu.memory_space<vmem>>, %arg7: memref<1x1x16x1xf32, #tpu.memory_space<vmem>>) attributes {dimension_semantics = [#tpu.dimension_semantics<parallel>, #tpu.dimension_semantics<parallel>], iteration_bounds = array<i64: 2, 1>, scalar_prefetch = 0 : i64, scratch_operands = 0 : i64, tpu.core_type = #tpu.core_type<tc>, window_params = [{transform_indices = @transform_0, window_bounds = array<i64: 1, 1, 32, 10>}, {pipeline_mode = #tpu.pipeline_mode<synchronous>, transform_indices = @transform_1, window_bounds = array<i64: 5, 16, 32>}, {pipeline_mode = #tpu.pipeline_mode<synchronous>, transform_indices = @transform_2, window_bounds = array<i64: 16, 1>}, {transform_indices = @transform_3, window_bounds = array<i64: 1, 16, 16>}, {transform_indices = @transform_4, window_bounds = array<i64: 1, 1, 16, 1>}, {transform_indices = @transform_5, window_bounds = array<i64: 1, 1, 16, 1>}]} {
    %c0 = arith.constant 0 : index
    %c0_0 = arith.constant 0 : index
    %c0_1 = arith.constant 0 : index
    %0 = vector.load %arg3[%c0, %c0_0, %c0_1] : memref<5x16x32xf32, #tpu.memory_space<vmem>>, vector<1x16x32xf32>
    %1 = vector.shape_cast %0 : vector<1x16x32xf32> to vector<16x32xf32>
    %c0_2 = arith.constant 0 : index
    %c0_3 = arith.constant 0 : index
    %c0_4 = arith.constant 0 : index
    %c2 = arith.constant 2 : index
    %2 = vector.load %arg2[%c0_2, %c0_3, %c0_4, %c2] : memref<1x1x32x10xf32, #tpu.memory_space<vmem>>, vector<1x1x32x8xf32>
    %3 = vector.shape_cast %2 : vector<1x1x32x8xf32> to vector<32x8xf32>
    %cst = arith.constant dense<0.000000e+00> : vector<16x8xf32>
    %4 = tpu.matmul %1, %3, %cst {dimension_numbers = #tpu.dot_dimension_numbers<[1], [0], [0], [1], [0, 0, 1, 1], [], []>} : vector<16x32xf32>, vector<32x8xf32>, vector<16x8xf32> -> vector<16x8xf32>
    %c2_5 = arith.constant 2 : index
    %c0_6 = arith.constant 0 : index
    %c0_7 = arith.constant 0 : index
    %5 = vector.load %arg3[%c2_5, %c0_6, %c0_7] : memref<5x16x32xf32, #tpu.memory_space<vmem>>, vector<1x16x32xf32>
    %6 = vector.shape_cast %5 : vector<1x16x32xf32> to vector<16x32xf32>
    %c0_8 = arith.constant 0 : index
    %c0_9 = arith.constant 0 : index
    %c0_10 = arith.constant 0 : index
    %c1 = arith.constant 1 : index
    %7 = vector.load %arg2[%c0_8, %c0_9, %c0_10, %c1] : memref<1x1x32x10xf32, #tpu.memory_space<vmem>>, vector<1x1x32x8xf32>
    %8 = vector.shape_cast %7 : vector<1x1x32x8xf32> to vector<32x8xf32>
    %cst_11 = arith.constant dense<0.000000e+00> : vector<16x8xf32>
    %9 = tpu.matmul %6, %8, %cst_11 {dimension_numbers = #tpu.dot_dimension_numbers<[1], [0], [0], [1], [0, 0, 1, 1], [], []>} : vector<16x32xf32>, vector<32x8xf32>, vector<16x8xf32> -> vector<16x8xf32>
    %10 = arith.addf %4, %9 : vector<16x8xf32>
    %c4 = arith.constant 4 : index
    %c0_12 = arith.constant 0 : index
    %c0_13 = arith.constant 0 : index
    %11 = vector.load %arg3[%c4, %c0_12, %c0_13] : memref<5x16x32xf32, #tpu.memory_space<vmem>>, vector<1x16x32xf32>
    %12 = vector.shape_cast %11 : vector<1x16x32xf32> to vector<16x32xf32>
    %c0_14 = arith.constant 0 : index
    %c0_15 = arith.constant 0 : index
    %c0_16 = arith.constant 0 : index
    %c0_17 = arith.constant 0 : index
    %13 = vector.load %arg2[%c0_14, %c0_15, %c0_16, %c0_17] : memref<1x1x32x10xf32, #tpu.memory_space<vmem>>, vector<1x1x32x8xf32>
    %14 = vector.shape_cast %13 : vector<1x1x32x8xf32> to vector<32x8xf32>
    %cst_18 = arith.constant dense<0.000000e+00> : vector<16x8xf32>
    %15 = tpu.matmul %12, %14, %cst_18 {dimension_numbers = #tpu.dot_dimension_numbers<[1], [0], [0], [1], [0, 0, 1, 1], [], []>} : vector<16x32xf32>, vector<32x8xf32>, vector<16x8xf32> -> vector<16x8xf32>
    %16 = arith.addf %10, %15 : vector<16x8xf32>
    %c1_19 = arith.constant 1 : index
    %c0_20 = arith.constant 0 : index
    %c0_21 = arith.constant 0 : index
    %17 = vector.load %arg3[%c1_19, %c0_20, %c0_21] : memref<5x16x32xf32, #tpu.memory_space<vmem>>, vector<1x16x32xf32>
    %18 = vector.shape_cast %17 : vector<1x16x32xf32> to vector<16x32xf32>
    %c0_22 = arith.constant 0 : index
    %c0_23 = arith.constant 0 : index
    %c0_24 = arith.constant 0 : index
    %c2_25 = arith.constant 2 : index
    %19 = vector.load %arg2[%c0_22, %c0_23, %c0_24, %c2_25] : memref<1x1x32x10xf32, #tpu.memory_space<vmem>>, vector<1x1x32x8xf32>
    %20 = vector.shape_cast %19 : vector<1x1x32x8xf32> to vector<32x8xf32>
    %cst_26 = arith.constant dense<0.000000e+00> : vector<16x8xf32>
    %21 = tpu.matmul %18, %20, %cst_26 {dimension_numbers = #tpu.dot_dimension_numbers<[1], [0], [0], [1], [0, 0, 1, 1], [], []>} : vector<16x32xf32>, vector<32x8xf32>, vector<16x8xf32> -> vector<16x8xf32>
    %c3 = arith.constant 3 : index
    %c0_27 = arith.constant 0 : index
    %c0_28 = arith.constant 0 : index
    %22 = vector.load %arg3[%c3, %c0_27, %c0_28] : memref<5x16x32xf32, #tpu.memory_space<vmem>>, vector<1x16x32xf32>
    %23 = vector.shape_cast %22 : vector<1x16x32xf32> to vector<16x32xf32>
    %c0_29 = arith.constant 0 : index
    %c0_30 = arith.constant 0 : index
    %c0_31 = arith.constant 0 : index
    %c1_32 = arith.constant 1 : index
    %24 = vector.load %arg2[%c0_29, %c0_30, %c0_31, %c1_32] : memref<1x1x32x10xf32, #tpu.memory_space<vmem>>, vector<1x1x32x8xf32>
    %25 = vector.shape_cast %24 : vector<1x1x32x8xf32> to vector<32x8xf32>
    %cst_33 = arith.constant dense<0.000000e+00> : vector<16x8xf32>
    %26 = tpu.matmul %23, %25, %cst_33 {dimension_numbers = #tpu.dot_dimension_numbers<[1], [0], [0], [1], [0, 0, 1, 1], [], []>} : vector<16x32xf32>, vector<32x8xf32>, vector<16x8xf32> -> vector<16x8xf32>
    %27 = arith.addf %21, %26 : vector<16x8xf32>
    %28 = vector.shape_cast %16 : vector<16x8xf32> to vector<16x8x1xf32>
    %29 = vector.shape_cast %27 : vector<16x8xf32> to vector<16x8x1xf32>
    %30 = tpu.concatenate %28, %29 in 2 : vector<16x8x1xf32>, vector<16x8x1xf32> -> vector<16x8x2xf32>
    %31 = vector.shape_cast %30 : vector<16x8x2xf32> to vector<16x16xf32>
    %c0_34 = arith.constant 0 : index
    %c0_35 = arith.constant 0 : index
    %32 = vector.load %arg4[%c0_34, %c0_35] : memref<16x1xf32, #tpu.memory_space<vmem>>, vector<16x1xf32>
    %33 = vector.broadcast %32 : vector<16x1xf32> to vector<16x16xf32>
    %34 = arith.addf %31, %33 : vector<16x16xf32>
    %35 = tpu.iota {dimensions = array<i32: 1>} : vector<1x16xi32>
    %c16_i32 = arith.constant 16 : i32
    %36 = arith.muli %arg1, %c16_i32 : i32
    %37 = vector.broadcast %36 : i32 to vector<1x16xi32>
    %38 = arith.addi %35, %37 : vector<1x16xi32>
    %c16_i32_36 = arith.constant 16 : i32
    %39 = vector.broadcast %c16_i32_36 : i32 to vector<1x16xi32>
    %40 = arith.cmpi slt, %38, %39 : vector<1x16xi32>
    %41 = arith.extui %40 : vector<1x16xi1> to vector<1x16xi32>
    %42 = arith.sitofp %41 : vector<1x16xi32> to vector<1x16xf32>
    %43 = vector.broadcast %42 : vector<1x16xf32> to vector<16x16xf32>
    %44 = arith.mulf %34, %43 : vector<16x16xf32>
    %cst_37 = arith.constant dense<0.000000e+00> : vector<16xf32>
    %45 = vector.multi_reduction <add>, %44, %cst_37 [1] : vector<16x16xf32> to vector<16xf32>
    %46 = vector.shape_cast %45 : vector<16xf32> to vector<16x1xf32>
    %c0_38 = arith.constant 0 : index
    %c0_39 = arith.constant 0 : index
    %c0_40 = arith.constant 0 : index
    %c0_41 = arith.constant 0 : index
    %47 = vector.load %arg6[%c0_38, %c0_39, %c0_40, %c0_41] : memref<1x1x16x1xf32, #tpu.memory_space<vmem>>, vector<1x1x16x1xf32>
    %48 = vector.shape_cast %47 : vector<1x1x16x1xf32> to vector<16x1xf32>
    %49 = vector.shape_cast %46 : vector<16x1xf32> to vector<1x1x16x1xf32>
    tpu.vector_store %arg6[%c0_38, %c0_39, %c0_40, %c0_41], %49 {strides = array<i32>} : memref<1x1x16x1xf32, #tpu.memory_space<vmem>>, vector<1x1x16x1xf32>,
    %50 = arith.mulf %44, %34 : vector<16x16xf32>
    %cst_42 = arith.constant dense<0.000000e+00> : vector<16xf32>
    %51 = vector.multi_reduction <add>, %50, %cst_42 [1] : vector<16x16xf32> to vector<16xf32>
    %52 = vector.shape_cast %51 : vector<16xf32> to vector<16x1xf32>
    %c0_43 = arith.constant 0 : index
    %c0_44 = arith.constant 0 : index
    %c0_45 = arith.constant 0 : index
    %c0_46 = arith.constant 0 : index
    %53 = vector.load %arg7[%c0_43, %c0_44, %c0_45, %c0_46] : memref<1x1x16x1xf32, #tpu.memory_space<vmem>>, vector<1x1x16x1xf32>
    %54 = vector.shape_cast %53 : vector<1x1x16x1xf32> to vector<16x1xf32>
    %55 = vector.shape_cast %52 : vector<16x1xf32> to vector<1x1x16x1xf32>
    tpu.vector_store %arg7[%c0_43, %c0_44, %c0_45, %c0_46], %55 {strides = array<i32>} : memref<1x1x16x1xf32, #tpu.memory_space<vmem>>, vector<1x1x16x1xf32>,
    %c0_47 = arith.constant 0 : index
    %c0_48 = arith.constant 0 : index
    %c0_49 = arith.constant 0 : index
    %56 = vector.load %arg5[%c0_47, %c0_48, %c0_49] : memref<1x16x16xf32, #tpu.memory_space<vmem>>, vector<1x16x16xf32>
    %57 = vector.shape_cast %56 : vector<1x16x16xf32> to vector<16x16xf32>
    %58 = vector.shape_cast %34 : vector<16x16xf32> to vector<1x16x16xf32>
    tpu.vector_store %arg5[%c0_47, %c0_48, %c0_49], %58 {strides = array<i32>} : memref<1x16x16xf32, #tpu.memory_space<vmem>>, vector<1x16x16xf32>,
    return
  }
  func.func @transform_0(%arg0: i32, %arg1: i32) -> (i32, i32, i32, i32) {
    %c0_i32 = arith.constant 0 : i32
    %c0_i32_0 = arith.constant 0 : i32
    %c0_i32_1 = arith.constant 0 : i32
    return %arg1, %arg0, %c0_i32, %c0_i32_0 : i32, i32, i32, i32
  }
  func.func @transform_1(%arg0: i32, %arg1: i32) -> (i32, i32, i32) {
    %c0_i32 = arith.constant 0 : i32
    %c0_i32_0 = arith.constant 0 : i32
    %c0_i32_1 = arith.constant 0 : i32
    %c0_i32_2 = arith.constant 0 : i32
    return %c0_i32, %c0_i32_0, %c0_i32_1 : i32, i32, i32
  }
  func.func @transform_2(%arg0: i32, %arg1: i32) -> (i32, i32) {
    %c0_i32 = arith.constant 0 : i32
    %c0_i32_0 = arith.constant 0 : i32
    %c0_i32_1 = arith.constant 0 : i32
    return %c0_i32, %c0_i32_0 : i32, i32
  }
  func.func @transform_3(%arg0: i32, %arg1: i32) -> (i32, i32, i32) {
    %c0_i32 = arith.constant 0 : i32
    %c0_i32_0 = arith.constant 0 : i32
    return %arg0, %c0_i32, %arg1 : i32, i32, i32
  }
  func.func @transform_4(%arg0: i32, %arg1: i32) -> (i32, i32, i32, i32) {
    %c0_i32 = arith.constant 0 : i32
    %c0_i32_0 = arith.constant 0 : i32
    %c0_i32_1 = arith.constant 0 : i32
    return %arg0, %arg1, %c0_i32, %c0_i32_0 : i32, i32, i32, i32
  }
  func.func @transform_5(%arg0: i32, %arg1: i32) -> (i32, i32, i32, i32) {
    %c0_i32 = arith.constant 0 : i32
    %c0_i32_0 = arith.constant 0 : i32
    %c0_i32_1 = arith.constant 0 : i32
    return %arg0, %arg1, %c0_i32, %c0_i32_0 : i32, i32, i32, i32
  }
}

</mosaic_0001>

<llo_original>
// kernel: tpu_custom_call.1
$region0: #{tpu_custom_call.1}
  #allocation0 [shape = 'u32[]', space=smem, size = 0x4, offset = 0x4, fixed_abs, tag = 'smem constant byte address 0x4 - core index']
  #allocation1 [shape = 'u32[144,128]{1,0:T(1,128)}', space=vmem, size = 0x12000, scoped, tag = 'internal scratch']
  %s0 = inlined_call_operand.vmem [shape: f32[1,2,32,10], index: 0, kind: input, shape index: {}]
  %s1 = inlined_call_operand.vmem [shape: f32[5,16,32], index: 1, kind: input, shape index: {}]
  %s2 = inlined_call_operand.vmem [shape: f32[16,1], index: 2, kind: input, shape index: {}]
  %s3 = inlined_call_operand.hbm [shape: f32[2,16,16], index: 3, kind: output, shape index: {0}]
  %s4 = inlined_call_operand.vmem [shape: f32[2,1,16,1], index: 4, kind: output, shape index: {1}]
  %s5 = inlined_call_operand.vmem [shape: f32[2,1,16,1], index: 5, kind: output, shape index: {2}]
  %6 = xla_tuple %s3, %s4, %s5
  %s7 = sld [smem:[#allocation0]]
  $region61: #{tpu_custom_call.1} parent=0
    _
  %s9 = ssub.s32 1, %s7
  %s10 = scalar_select 0, %s9, %s7
  $region1: #{tpu_custom_call.1} parent=0
    #allocation2 [shape = 'u8[16384]{0}', space=vmem, size = 0x4000, scoped, tag = 'output window, operand 0']
    #allocation3 [shape = 's32[2]{0}', space=sflag, size = 0x8, scoped, tag = 'scoped memory for tpu_custom_call.1']
    %11 = vsyncpa [#allocation3], 0
    %s12 = scalar_lea.sflag [#allocation3], 1
    %13 = vsyncpa %s12, 0
    loop: start=0, step=1, limit=4
    $region2: #{tpu_custom_call.1} parent=1 // loop_pre_header
      _
    $region3: #{tpu_custom_call.1} parent=1 // loop_header
      %s15 = sphi 0, %s19
      %p16 = scmp.ge.s32.totalorder %s15, 4
      %s22 = sphi 0, %s34
      %s23 = sphi 0, %s30
      %s24 = sphi 0, %s22
      %s25 = sphi 0, %s23
      %s26 = sphi 0, %s24
      %s27 = sphi 0, %s25
      %s39 = sphi 0, %s41
      %s42 = sphi 0, %s39
      %s43 = sphi 0, %s42
      %s59 = sphi 0, %s43
      %s63 = sphi 0, %s63
      %s65 = sphi 0, %s63
      %s66 = sphi 0, %s65
      %s80 = sphi 0, %s66
      %s84 = sphi 0, %s84
      %s86 = sphi 0, %s84
      %s87 = sphi 0, %s86
      %s101 = sphi 0, %s87
      %s109 = sphi 0, %s111
      %s112 = sphi 0, %s109
      %s113 = sphi 0, %s112
      %s129 = sphi 0, %s113
      %s137 = sphi 0, %s139
      %s140 = sphi 0, %s137
      %s141 = sphi 0, %s140
      %s157 = sphi 0, %s141
      %s165 = sphi 0, %s167
      %s168 = sphi 0, %s165
      %s169 = sphi 0, %s168
      %s185 = sphi 0, %s169
    $region4: #{tpu_custom_call.1} parent=1 // loop_header_branch
      %18 = sbr.rel (%p16) target = $region8
    $region5: #{tpu_custom_call.1} parent=1 // loop_body
      %s20 = ssub.s32 %s15, 1
      %s21 = ssub.s32 %s15, 2
      %s28 = sadd.s32 1, %s23
      %p29 = scmp.ge.s32.totalorder %s28, 1
      %s30 = scalar_select %p29, 0, %s28
      %s31 = sadd.s32 1, %s22
      %s32 = scalar_select %p29, %s31, %s22
      %p33 = scmp.ge.s32.totalorder %s32, 2
      %s34 = scalar_select %p33, 0, %s32
      %s35 = ssub.s32 %s23, %s30
      %s36 = ssub.s32 %s22, %s34
      %s37 = sor.u32 %s35, %s36
      %p38 = scmp.eq.s32.totalorder %s37, 0
      %s40 = sadd.s32 %s39, 1
      %s41 = scalar_select %p38, %s39, %s40
      %p44 = pneg %p38
      %p45 = scmp.eq.s32.totalorder %s15, 1
      %p46 = por %p44, %p45
      %p47 = scmp.ne.s32.totalorder %s39, %s42
      %p48 = scmp.eq.s32.totalorder %s15, 0
      %p49 = por %p47, %p48
      %p50 = scmp.ne.s32.totalorder %s39, %s42
      %p51 = scmp.eq.s32.totalorder %s20, 1
      %p52 = por %p50, %p51
      %p53 = scmp.ne.s32.totalorder %s42, %s43
      %p54 = scmp.eq.s32.totalorder %s20, 0
      %p55 = por %p53, %p54
      %p56 = scmp.ne.s32.totalorder %s42, %s43
      %p57 = scmp.eq.s32.totalorder %s21, 1
      %p58 = por %p56, %p57
      %p60 = scmp.ne.s32.totalorder %s43, %s59
      %p61 = scmp.eq.s32.totalorder %s21, 0
      %p62 = por %p60, %p61
      %s64 = sadd.s32 %s63, 1
      %p67 = scmp.eq.s32.totalorder %s15, 1
      %p68 = scmp.ne.s32.totalorder %s63, %s65
      %p69 = scmp.eq.s32.totalorder %s15, 0
      %p70 = por %p68, %p69
      %p71 = scmp.ne.s32.totalorder %s63, %s65
      %p72 = scmp.eq.s32.totalorder %s20, 1
      %p73 = por %p71, %p72
      %p74 = scmp.ne.s32.totalorder %s65, %s66
      %p75 = scmp.eq.s32.totalorder %s20, 0
      %p76 = por %p74, %p75
      %p77 = scmp.ne.s32.totalorder %s65, %s66
      %p78 = scmp.eq.s32.totalorder %s21, 1
      %p79 = por %p77, %p78
      %p81 = scmp.ne.s32.totalorder %s66, %s80
      %p82 = scmp.eq.s32.totalorder %s21, 0
      %p83 = por %p81, %p82
      %s85 = sadd.s32 %s84, 1
      %p88 = scmp.eq.s32.totalorder %s15, 1
      %p89 = scmp.ne.s32.totalorder %s84, %s86
      %p90 = scmp.eq.s32.totalorder %s15, 0
      %p91 = por %p89, %p90
      %p92 = scmp.ne.s32.totalorder %s84, %s86
      %p93 = scmp.eq.s32.totalorder %s20, 1
      %p94 = por %p92, %p93
      %p95 = scmp.ne.s32.totalorder %s86, %s87
      %p96 = scmp.eq.s32.totalorder %s20, 0
      %p97 = por %p95, %p96
      %p98 = scmp.ne.s32.totalorder %s86, %s87
      %p99 = scmp.eq.s32.totalorder %s21, 1
      %p100 = por %p98, %p99
      %p102 = scmp.ne.s32.totalorder %s87, %s101
      %p103 = scmp.eq.s32.totalorder %s21, 0
      %p104 = por %p102, %p103
      %s105 = ssub.s32 %s22, %s34
      %s106 = ssub.s32 %s23, %s30
      %s107 = sor.u32 %s105, %s106
      %p108 = scmp.eq.s32.totalorder %s107, 0
      %s110 = sadd.s32 %s109, 1
      %s111 = scalar_select %p108, %s109, %s110
      %p114 = pneg %p108
      %p115 = scmp.eq.s32.totalorder %s15, 1
      %p116 = por %p114, %p115
      %p117 = scmp.ne.s32.totalorder %s109, %s112
      %p118 = scmp.eq.s32.totalorder %s15, 0
      %p119 = por %p117, %p118
      %p120 = scmp.ne.s32.totalorder %s109, %s112
      %p121 = scmp.eq.s32.totalorder %s20, 1
      %p122 = por %p120, %p121
      %p123 = scmp.ne.s32.totalorder %s112, %s113
      %p124 = scmp.eq.s32.totalorder %s20, 0
      %p125 = por %p123, %p124
      %p126 = scmp.ne.s32.totalorder %s112, %s113
      %p127 = scmp.eq.s32.totalorder %s21, 1
      %p128 = por %p126, %p127
      %p130 = scmp.ne.s32.totalorder %s113, %s129
      %p131 = scmp.eq.s32.totalorder %s21, 0
      %p132 = por %p130, %p131
      %s133 = ssub.s32 %s22, %s34
      %s134 = ssub.s32 %s23, %s30
      %s135 = sor.u32 %s133, %s134
      %p136 = scmp.eq.s32.totalorder %s135, 0
      %s138 = sadd.s32 %s137, 1
      %s139 = scalar_select %p136, %s137, %s138
      %p142 = pneg %p136
      %p143 = scmp.eq.s32.totalorder %s15, 1
      %p144 = por %p142, %p143
      %p145 = scmp.ne.s32.totalorder %s137, %s140
      %p146 = scmp.eq.s32.totalorder %s15, 0
      %p147 = por %p145, %p146
      %p148 = scmp.ne.s32.totalorder %s137, %s140
      %p149 = scmp.eq.s32.totalorder %s20, 1
      %p150 = por %p148, %p149
      %p151 = scmp.ne.s32.totalorder %s140, %s141
      %p152 = scmp.eq.s32.totalorder %s20, 0
      %p153 = por %p151, %p152
      %p154 = scmp.ne.s32.totalorder %s140, %s141
      %p155 = scmp.eq.s32.totalorder %s21, 1
      %p156 = por %p154, %p155
      %p158 = scmp.ne.s32.totalorder %s141, %s157
      %p159 = scmp.eq.s32.totalorder %s21, 0
      %p160 = por %p158, %p159
      %s161 = ssub.s32 %s22, %s34
      %s162 = ssub.s32 %s23, %s30
      %s163 = sor.u32 %s161, %s162
      %p164 = scmp.eq.s32.totalorder %s163, 0
      %s166 = sadd.s32 %s165, 1
      %s167 = scalar_select %p164, %s165, %s166
      %p170 = pneg %p164
      %p171 = scmp.eq.s32.totalorder %s15, 1
      %p172 = por %p170, %p171
      %p173 = scmp.ne.s32.totalorder %s165, %s168
      %p174 = scmp.eq.s32.totalorder %s15, 0
      %p175 = por %p173, %p174
      %p176 = scmp.ne.s32.totalorder %s165, %s168
      %p177 = scmp.eq.s32.totalorder %s20, 1
      %p178 = por %p176, %p177
      %p179 = scmp.ne.s32.totalorder %s168, %s169
      %p180 = scmp.eq.s32.totalorder %s20, 0
      %p181 = por %p179, %p180
      %p182 = scmp.ne.s32.totalorder %s168, %s169
      %p183 = scmp.eq.s32.totalorder %s21, 1
      %p184 = por %p182, %p183
      %p186 = scmp.ne.s32.totalorder %s169, %s185
      %p187 = scmp.eq.s32.totalorder %s21, 0
      %p188 = por %p186, %p187
      %p189 = scmp.le.s32.totalorder 1, %s15
      %p190 = scmp.lt.s32.totalorder %s15, 3
      %p191 = pnand %p189, %p190
      %p192 = pneg %p191
      // Predicated region
      $region9: #{tpu_custom_call.1} parent=5 // pred_check
        _
      $region10: #{tpu_custom_call.1} parent=5 // pred_check_branch
        %194 = sbr.rel (%p191) target = $region12
      $region11: #{tpu_custom_call.1} parent=5 // pred_region
        %s195 = ssub.s32 %s15, 1
        // Predicated region
        $region13: #{tpu_custom_call.1} parent=11 // pred_check
          %p196 = pneg %p76
        $region14: #{tpu_custom_call.1} parent=11 // pred_check_branch
          %198 = sbr.rel (%p196) target = $region16
        $region15: #{tpu_custom_call.1} parent=11 // pred_region
          _
        $region16: #{tpu_custom_call.1} parent=11 // pred_fallthru
          _
        // Predicated region
        $region17: #{tpu_custom_call.1} parent=11 // pred_check
          %p199 = pneg %p97
        $region18: #{tpu_custom_call.1} parent=11 // pred_check_branch
          %201 = sbr.rel (%p199) target = $region20
        $region19: #{tpu_custom_call.1} parent=11 // pred_region
          _
        $region20: #{tpu_custom_call.1} parent=11 // pred_fallthru
          _
      $region12: #{tpu_custom_call.1} parent=5 // pred_fallthru
        _
      %p202 = scmp.lt.s32.totalorder %s15, 2
      // Predicated region
      $region21: #{tpu_custom_call.1} parent=5 // pred_check
        %p203 = pneg %p202
      $region22: #{tpu_custom_call.1} parent=5 // pred_check_branch
        %205 = sbr.rel (%p203) target = $region24
      $region23: #{tpu_custom_call.1} parent=5 // pred_region
        // Predicated region
        $region25: #{tpu_custom_call.1} parent=23 // pred_check
          %p206 = pneg %p49
        $region26: #{tpu_custom_call.1} parent=23 // pred_check_branch
          %208 = sbr.rel (%p206) target = $region28
        $region27: #{tpu_custom_call.1} parent=23 // pred_region
          %p209 = scmp.lt.s32.totalorder %s23, 0
          %s210 = scalar_select %p209, %s23, 0
          %p211 = scmp.lt.s32.totalorder %s22, 1
          %s212 = scalar_select %p211, %s22, 1
          %s213 = smul.addr %s212, 4
          %s214 = smul.addr %s210, 8
          %s215 = sadd.s32 %s213, %s214
          %s216 = smul.addr %s215, 8
          %s217 = scalar_lea.vmem %s0, %s216
        $region28: #{tpu_custom_call.1} parent=23 // pred_fallthru
          _
      $region24: #{tpu_custom_call.1} parent=5 // pred_fallthru
        _
      %p218 = scmp.le.s32.totalorder 1, %s15
      %p219 = scmp.lt.s32.totalorder %s15, 3
      %p220 = pnand %p218, %p219
      %p221 = pneg %p220
      // Predicated region
      $region29: #{tpu_custom_call.1} parent=5 // pred_check
        _
      $region30: #{tpu_custom_call.1} parent=5 // pred_check_branch
        %223 = sbr.rel (%p220) target = $region32
      $region31: #{tpu_custom_call.1} parent=5 // pred_region
        %s224 = ssub.s32 %s15, 1
        %p225 = scmp.lt.s32.totalorder %s25, 0
        %s226 = scalar_select %p225, %s25, 0
        %p227 = scmp.lt.s32.totalorder %s24, 1
        %s228 = scalar_select %p227, %s24, 1
        %s229 = smul.addr %s228, 4
        %s230 = smul.addr %s226, 8
        %s231 = sadd.s32 %s229, %s230
        %s232 = smul.addr %s231, 8
        %s233 = scalar_lea.vmem %s0, %s232
        %p234 = pneg %p55
        %p235 = pneg %p52
        %p236 = pneg %p76
        %p237 = pneg %p73
        %p238 = pneg %p97
        %p239 = pneg %p94
        %p240 = pneg %p125
        %p241 = pneg %p122
        %s242 = sand.u32 %s112, 1
        %s243 = scalar_lea.sflag [#allocation3], %s242
        %s244 = sand.u32 %s112, 1
        %s245 = smul.addr %s244, 16
        %s246 = scalar_lea.vmem [#allocation2], %s245
        %p247 = pneg %p153
        %p248 = pneg %p150
        %p249 = scmp.lt.s32.totalorder %s24, 1
        %s250 = scalar_select %p249, %s24, 1
        %p251 = scmp.lt.s32.totalorder %s25, 0
        %s252 = scalar_select %p251, %s25, 0
        %s253 = smul.addr %s252, 2
        %s254 = smul.addr %s250, 2
        %s255 = sadd.s32 %s253, %s254
        %s256 = smul.addr %s255, 8
        %s257 = scalar_lea.vmem %s4, %s256
        %p258 = pneg %p181
        %p259 = pneg %p178
        %p260 = scmp.lt.s32.totalorder %s24, 1
        %s261 = scalar_select %p260, %s24, 1
        %p262 = scmp.lt.s32.totalorder %s25, 0
        %s263 = scalar_select %p262, %s25, 0
        %s264 = smul.addr %s263, 2
        %s265 = smul.addr %s261, 2
        %s266 = sadd.s32 %s264, %s265
        %s267 = smul.addr %s266, 8
        %s268 = scalar_lea.vmem %s5, %s267
        %p269 = scmp.lt.s32.totalorder %s25, 0
        %s270 = scalar_select %p269, %s25, 0
        %p271 = scmp.lt.s32.totalorder %s24, 1
        %s272 = scalar_select %p271, %s24, 1
        %s273 = smul.addr %s272, 4
        %s274 = smul.addr %s270, 8
        %s275 = sadd.s32 %s273, %s274
        %s276 = smul.addr %s275, 8
        %s277 = scalar_lea.vmem %s0, %s276
        %p278 = scmp.lt.s32.totalorder %s24, 1
        %s279 = scalar_select %p278, %s24, 1
        %p280 = scmp.lt.s32.totalorder %s25, 0
        %s281 = scalar_select %p280, %s25, 0
        %s282 = smul.addr %s281, 2
        %s283 = smul.addr %s279, 2
        %s284 = sadd.s32 %s282, %s283
        %s285 = smul.addr %s284, 8
        %s286 = scalar_lea.vmem %s4, %s285
        %p287 = scmp.lt.s32.totalorder %s24, 1
        %s288 = scalar_select %p287, %s24, 1
        %p289 = scmp.lt.s32.totalorder %s25, 0
        %s290 = scalar_select %p289, %s25, 0
        %s291 = smul.addr %s290, 2
        %s292 = smul.addr %s288, 2
        %s293 = sadd.s32 %s291, %s292
        %s294 = smul.addr %s293, 8
        %s295 = scalar_lea.vmem %s5, %s294
        %v296 = vld [vmem:[%s1] sm:$0xff]
        %v297 = vld [vmem:[%s1 + $0x8] sm:$0xff]
        %v298 = vld [vmem:[%s277] sm:$0xff]
        %v299 = vld [vmem:[%s277 + $0x8] sm:$0xff]
        %v300 = vld [vmem:[%s277 + $0x10] sm:$0xff]
        %v301 = vld [vmem:[%s277 + $0x18] sm:$0xff]
        %s302 = scalar_lea.vmem %s1, 32
        %v303 = vld [vmem:[%s302] sm:$0xff]
        %v304 = vld [vmem:[%s302 + $0x8] sm:$0xff]
        %309 = vrot.lane.b32.xlu0 %v298, 127
        %v310 = vpop.permute.xlu0 %309
        %311 = vrot.lane.b32.xlu0 %v299, 127
        %v312 = vpop.permute.xlu0 %311
        %313 = vrot.lane.b32.xlu0 %v300, 127
        %v314 = vpop.permute.xlu0 %313
        %315 = vrot.lane.b32.xlu0 %v301, 127
        %v316 = vpop.permute.xlu0 %315
        %vm321 = vcmask 261120
        %v323 = vsel %vm321, %v303, 0
        %v326 = vsel %vm321, %v304, 0
        %328 = vmatprep.subr.mxu0 0.0
        %329 = vmatpush1.msra.mxu0 %v310
        %330 = vmatprep.subr.mxu0 0.0
        %331 = vmatpush1.msra.mxu0 %v312
        %332 = vmatprep.subr.mxu0 0.0
        %333 = vmatpush1.msra.mxu0 %v314
        %334 = vmatprep.subr.mxu0 0.0
        %335 = vmatpush1.msra.mxu0 %v316
        %336 = vmatprep.subr.mxu0 0.0
        %337 = vmatpush1.msra.mxu0 0.0
        %338 = vmatprep.subr.mxu0 0.0
        %339 = vmatpush1.msra.mxu0 0.0
        %340 = vmatprep.subr.mxu0 0.0
        %341 = vmatpush1.msra.mxu0 0.0
        %342 = vmatprep.subr.mxu0 0.0
        %343 = vmatpush1.msra.mxu0 0.0
        %344 = vmatprep.subr.mxu0 0.0
        %345 = vmatpush1.msra.mxu0 0.0
        %346 = vmatprep.subr.mxu0 0.0
        %347 = vmatpush1.msra.mxu0 0.0
        %348 = vmatprep.subr.mxu0 0.0
        %349 = vmatpush1.msra.mxu0 0.0
        %350 = vmatprep.subr.mxu0 0.0
        %351 = vmatpush1.msra.mxu0 0.0
        %352 = vmatprep.subr.mxu0 0.0
        %353 = vmatpush1.msra.mxu0 0.0
        %354 = vmatprep.subr.mxu0 0.0
        %355 = vmatpush1.msra.mxu0 0.0
        %356 = vmatprep.subr.mxu0 0.0
        %357 = vmatpush1.msra.mxu0 0.0
        %358 = vmatprep.subr.mxu0 0.0
        %359 = vmatpush1.msra.mxu0 0.0
        %360 = vmatprep.subr.mxu0 0.0
        %361 = vmatpush1.msra.mxu0 0.0
        %362 = vmatprep.subr.mxu0 0.0
        %363 = vmatpush1.msra.mxu0 0.0
        %364 = vmatprep.subr.mxu0 0.0
        %365 = vmatpush1.msra.mxu0 0.0
        %366 = vmatprep.subr.mxu0 0.0
        %367 = vmatpush1.msra.mxu0 0.0
        %368 = vmatprep.subr.mxu0 0.0
        %369 = vmatpush1.msra.mxu0 0.0
        %370 = vmatprep.subr.mxu0 0.0
        %371 = vmatpush1.msra.mxu0 0.0
        %372 = vmatprep.subr.mxu0 0.0
        %373 = vmatpush1.msra.mxu0 0.0
        %374 = vmatprep.subr.mxu0 0.0
        %375 = vmatpush1.msra.mxu0 0.0
        %376 = vmatprep.subr.mxu0 0.0
        %377 = vmatpush1.msra.mxu0 0.0
        %378 = vmatprep.subr.mxu0 0.0
        %379 = vmatpush1.msra.mxu0 0.0
        %380 = vmatprep.subr.mxu0 0.0
        %381 = vmatpush1.msra.mxu0 0.0
        %382 = vmatprep.subr.mxu0 0.0
        %383 = vmatpush1.msra.mxu0 0.0
        %384 = vmatprep.subr.mxu0 0.0
        %385 = vmatpush1.msra.mxu0 0.0
        %386 = vmatprep.subr.mxu0 0.0
        %387 = vmatpush1.msra.mxu0 0.0
        %388 = vmatprep.subr.mxu0 0.0
        %389 = vmatpush1.msra.mxu0 0.0
        %390 = vmatprep.subr.mxu0 0.0
        %391 = vmatpush1.msra.mxu0 0.0
        %392 = vmatprep.mubr.f32.mxu0 0.0
        %393 = vmatmul.mubr.f32.gmra.mrb[0].mxu0 %v323
        %v394 = vpop.f32.mrb[0].mxu0
        %v395 = vadd.f32 0.0, %v394
        %v396 = vpop.f32.mrb[0].mxu0
        %397 = vmatprep.mubr.f32.mxu0 0.0
        %398 = vmatmul.mubr.f32.gmra.mrb[0].mxu0 %v326
        %v399 = vpop.f32.mrb[0].mxu0
        %v400 = vadd.f32 0.0, %v399
        %v401 = vpop.f32.mrb[0].mxu0
        %402 = vdwg.mxu0
        %403 = vrot.lane.b32.xlu0 %v298, 126
        %v404 = vpop.permute.xlu0 %403
        %405 = vrot.lane.b32.xlu0 %v299, 126
        %v406 = vpop.permute.xlu0 %405
        %407 = vrot.lane.b32.xlu0 %v300, 126
        %v408 = vpop.permute.xlu0 %407
        %409 = vrot.lane.b32.xlu0 %v301, 126
        %v410 = vpop.permute.xlu0 %409
        %v416 = vsel %vm321, %v296, 0
        %v419 = vsel %vm321, %v297, 0
        %421 = vmatprep.subr.mxu0 0.0
        %422 = vmatpush1.msra.mxu0 %v404
        %423 = vmatprep.subr.mxu0 0.0
        %424 = vmatpush1.msra.mxu0 %v406
        %425 = vmatprep.subr.mxu0 0.0
        %426 = vmatpush1.msra.mxu0 %v408
        %427 = vmatprep.subr.mxu0 0.0
        %428 = vmatpush1.msra.mxu0 %v410
        %429 = vmatprep.subr.mxu0 0.0
        %430 = vmatpush1.msra.mxu0 0.0
        %431 = vmatprep.subr.mxu0 0.0
        %432 = vmatpush1.msra.mxu0 0.0
        %433 = vmatprep.subr.mxu0 0.0
        %434 = vmatpush1.msra.mxu0 0.0
        %435 = vmatprep.subr.mxu0 0.0
        %436 = vmatpush1.msra.mxu0 0.0
        %437 = vmatprep.subr.mxu0 0.0
        %438 = vmatpush1.msra.mxu0 0.0
        %439 = vmatprep.subr.mxu0 0.0
        %440 = vmatpush1.msra.mxu0 0.0
        %441 = vmatprep.subr.mxu0 0.0
        %442 = vmatpush1.msra.mxu0 0.0
        %443 = vmatprep.subr.mxu0 0.0
        %444 = vmatpush1.msra.mxu0 0.0
        %445 = vmatprep.subr.mxu0 0.0
        %446 = vmatpush1.msra.mxu0 0.0
        %447 = vmatprep.subr.mxu0 0.0
        %448 = vmatpush1.msra.mxu0 0.0
        %449 = vmatprep.subr.mxu0 0.0
        %450 = vmatpush1.msra.mxu0 0.0
        %451 = vmatprep.subr.mxu0 0.0
        %452 = vmatpush1.msra.mxu0 0.0
        %453 = vmatprep.subr.mxu0 0.0
        %454 = vmatpush1.msra.mxu0 0.0
        %455 = vmatprep.subr.mxu0 0.0
        %456 = vmatpush1.msra.mxu0 0.0
        %457 = vmatprep.subr.mxu0 0.0
        %458 = vmatpush1.msra.mxu0 0.0
        %459 = vmatprep.subr.mxu0 0.0
        %460 = vmatpush1.msra.mxu0 0.0
        %461 = vmatprep.subr.mxu0 0.0
        %462 = vmatpush1.msra.mxu0 0.0
        %463 = vmatprep.subr.mxu0 0.0
        %464 = vmatpush1.msra.mxu0 0.0
        %465 = vmatprep.subr.mxu0 0.0
        %466 = vmatpush1.msra.mxu0 0.0
        %467 = vmatprep.subr.mxu0 0.0
        %468 = vmatpush1.msra.mxu0 0.0
        %469 = vmatprep.subr.mxu0 0.0
        %470 = vmatpush1.msra.mxu0 0.0
        %471 = vmatprep.subr.mxu0 0.0
        %472 = vmatpush1.msra.mxu0 0.0
        %473 = vmatprep.subr.mxu0 0.0
        %474 = vmatpush1.msra.mxu0 0.0
        %475 = vmatprep.subr.mxu0 0.0
        %476 = vmatpush1.msra.mxu0 0.0
        %477 = vmatprep.subr.mxu0 0.0
        %478 = vmatpush1.msra.mxu0 0.0
        %479 = vmatprep.subr.mxu0 0.0
        %480 = vmatpush1.msra.mxu0 0.0
        %481 = vmatprep.subr.mxu0 0.0
        %482 = vmatpush1.msra.mxu0 0.0
        %483 = vmatprep.subr.mxu0 0.0
        %484 = vmatpush1.msra.mxu0 0.0
        %485 = vmatprep.mubr.f32.mxu0 0.0
        %486 = vmatmul.mubr.f32.gmra.mrb[0].mxu0 %v416
        %v487 = vpop.f32.mrb[0].mxu0
        %v488 = vadd.f32 %v395, %v487
        %v489 = vpop.f32.mrb[0].mxu0
        %490 = vmatprep.mubr.f32.mxu0 0.0
        %491 = vmatmul.mubr.f32.gmra.mrb[0].mxu0 %v419
        %v492 = vpop.f32.mrb[0].mxu0
        %v493 = vadd.f32 %v400, %v492
        %v494 = vpop.f32.mrb[0].mxu0
        %495 = vdwg.mxu0
        %s496 = scalar_lea.vmem %s1, 64
        %v497 = vld [vmem:[%s496] sm:$0xff]
        %v498 = vld [vmem:[%s496 + $0x8] sm:$0xff]
        %v500 = vsel %vm321, %v497, 0
        %v503 = vsel %vm321, %v498, 0
        %505 = vmatprep.subr.mxu0 0.0
        %506 = vmatpush1.msra.mxu0 %v298
        %507 = vmatprep.subr.mxu0 0.0
        %508 = vmatpush1.msra.mxu0 %v299
        %509 = vmatprep.subr.mxu0 0.0
        %510 = vmatpush1.msra.mxu0 %v300
        %511 = vmatprep.subr.mxu0 0.0
        %512 = vmatpush1.msra.mxu0 %v301
        %513 = vmatprep.subr.mxu0 0.0
        %514 = vmatpush1.msra.mxu0 0.0
        %515 = vmatprep.subr.mxu0 0.0
        %516 = vmatpush1.msra.mxu0 0.0
        %517 = vmatprep.subr.mxu0 0.0
        %518 = vmatpush1.msra.mxu0 0.0
        %519 = vmatprep.subr.mxu0 0.0
        %520 = vmatpush1.msra.mxu0 0.0
        %521 = vmatprep.subr.mxu0 0.0
        %522 = vmatpush1.msra.mxu0 0.0
        %523 = vmatprep.subr.mxu0 0.0
        %524 = vmatpush1.msra.mxu0 0.0
        %525 = vmatprep.subr.mxu0 0.0
        %526 = vmatpush1.msra.mxu0 0.0
        %527 = vmatprep.subr.mxu0 0.0
        %528 = vmatpush1.msra.mxu0 0.0
        %529 = vmatprep.subr.mxu0 0.0
        %530 = vmatpush1.msra.mxu0 0.0
        %531 = vmatprep.subr.mxu0 0.0
        %532 = vmatpush1.msra.mxu0 0.0
        %533 = vmatprep.subr.mxu0 0.0
        %534 = vmatpush1.msra.mxu0 0.0
        %535 = vmatprep.subr.mxu0 0.0
        %536 = vmatpush1.msra.mxu0 0.0
        %537 = vmatprep.subr.mxu0 0.0
        %538 = vmatpush1.msra.mxu0 0.0
        %539 = vmatprep.subr.mxu0 0.0
        %540 = vmatpush1.msra.mxu0 0.0
        %541 = vmatprep.subr.mxu0 0.0
        %542 = vmatpush1.msra.mxu0 0.0
        %543 = vmatprep.subr.mxu0 0.0
        %544 = vmatpush1.msra.mxu0 0.0
        %545 = vmatprep.subr.mxu0 0.0
        %546 = vmatpush1.msra.mxu0 0.0
        %547 = vmatprep.subr.mxu0 0.0
        %548 = vmatpush1.msra.mxu0 0.0
        %549 = vmatprep.subr.mxu0 0.0
        %550 = vmatpush1.msra.mxu0 0.0
        %551 = vmatprep.subr.mxu0 0.0
        %552 = vmatpush1.msra.mxu0 0.0
        %553 = vmatprep.subr.mxu0 0.0
        %554 = vmatpush1.msra.mxu0 0.0
        %555 = vmatprep.subr.mxu0 0.0
        %556 = vmatpush1.msra.mxu0 0.0
        %557 = vmatprep.subr.mxu0 0.0
        %558 = vmatpush1.msra.mxu0 0.0
        %559 = vmatprep.subr.mxu0 0.0
        %560 = vmatpush1.msra.mxu0 0.0
        %561 = vmatprep.subr.mxu0 0.0
        %562 = vmatpush1.msra.mxu0 0.0
        %563 = vmatprep.subr.mxu0 0.0
        %564 = vmatpush1.msra.mxu0 0.0
        %565 = vmatprep.subr.mxu0 0.0
        %566 = vmatpush1.msra.mxu0 0.0
        %567 = vmatprep.subr.mxu0 0.0
        %568 = vmatpush1.msra.mxu0 0.0
        %569 = vmatprep.mubr.f32.mxu0 0.0
        %570 = vmatmul.mubr.f32.gmra.mrb[0].mxu0 %v500
        %v571 = vpop.f32.mrb[0].mxu0
        %v572 = vadd.f32 0.0, %v571
        %v573 = vpop.f32.mrb[0].mxu0
        %574 = vmatprep.mubr.f32.mxu0 0.0
        %575 = vmatmul.mubr.f32.gmra.mrb[0].mxu0 %v503
        %v576 = vpop.f32.mrb[0].mxu0
        %v577 = vadd.f32 0.0, %v576
        %v578 = vpop.f32.mrb[0].mxu0
        %579 = vdwg.mxu0
        %v580 = vadd.f32 %v488, %v572
        %v581 = vadd.f32 %v493, %v577
        %s582 = scalar_lea.vmem %s1, 16
        %v583 = vld [vmem:[%s582] sm:$0xff]
        %v584 = vld [vmem:[%s582 + $0x8] sm:$0xff]
        %s585 = scalar_lea.vmem %s1, 48
        %v586 = vld [vmem:[%s585] sm:$0xff]
        %v587 = vld [vmem:[%s585 + $0x8] sm:$0xff]
        %v589 = vsel %vm321, %v586, 0
        %v592 = vsel %vm321, %v587, 0
        %594 = vmatprep.subr.mxu0 0.0
        %595 = vmatpush1.msra.mxu0 %v310
        %596 = vmatprep.subr.mxu0 0.0
        %597 = vmatpush1.msra.mxu0 %v312
        %598 = vmatprep.subr.mxu0 0.0
        %599 = vmatpush1.msra.mxu0 %v314
        %600 = vmatprep.subr.mxu0 0.0
        %601 = vmatpush1.msra.mxu0 %v316
        %602 = vmatprep.subr.mxu0 0.0
        %603 = vmatpush1.msra.mxu0 0.0
        %604 = vmatprep.subr.mxu0 0.0
        %605 = vmatpush1.msra.mxu0 0.0
        %606 = vmatprep.subr.mxu0 0.0
        %607 = vmatpush1.msra.mxu0 0.0
        %608 = vmatprep.subr.mxu0 0.0
        %609 = vmatpush1.msra.mxu0 0.0
        %610 = vmatprep.subr.mxu0 0.0
        %611 = vmatpush1.msra.mxu0 0.0
        %612 = vmatprep.subr.mxu0 0.0
        %613 = vmatpush1.msra.mxu0 0.0
        %614 = vmatprep.subr.mxu0 0.0
        %615 = vmatpush1.msra.mxu0 0.0
        %616 = vmatprep.subr.mxu0 0.0
        %617 = vmatpush1.msra.mxu0 0.0
        %618 = vmatprep.subr.mxu0 0.0
        %619 = vmatpush1.msra.mxu0 0.0
        %620 = vmatprep.subr.mxu0 0.0
        %621 = vmatpush1.msra.mxu0 0.0
        %622 = vmatprep.subr.mxu0 0.0
        %623 = vmatpush1.msra.mxu0 0.0
        %624 = vmatprep.subr.mxu0 0.0
        %625 = vmatpush1.msra.mxu0 0.0
        %626 = vmatprep.subr.mxu0 0.0
        %627 = vmatpush1.msra.mxu0 0.0
        %628 = vmatprep.subr.mxu0 0.0
        %629 = vmatpush1.msra.mxu0 0.0
        %630 = vmatprep.subr.mxu0 0.0
        %631 = vmatpush1.msra.mxu0 0.0
        %632 = vmatprep.subr.mxu0 0.0
        %633 = vmatpush1.msra.mxu0 0.0
        %634 = vmatprep.subr.mxu0 0.0
        %635 = vmatpush1.msra.mxu0 0.0
        %636 = vmatprep.subr.mxu0 0.0
        %637 = vmatpush1.msra.mxu0 0.0
        %638 = vmatprep.subr.mxu0 0.0
        %639 = vmatpush1.msra.mxu0 0.0
        %640 = vmatprep.subr.mxu0 0.0
        %641 = vmatpush1.msra.mxu0 0.0
        %642 = vmatprep.subr.mxu0 0.0
        %643 = vmatpush1.msra.mxu0 0.0
        %644 = vmatprep.subr.mxu0 0.0
        %645 = vmatpush1.msra.mxu0 0.0
        %646 = vmatprep.subr.mxu0 0.0
        %647 = vmatpush1.msra.mxu0 0.0
        %648 = vmatprep.subr.mxu0 0.0
        %649 = vmatpush1.msra.mxu0 0.0
        %650 = vmatprep.subr.mxu0 0.0
        %651 = vmatpush1.msra.mxu0 0.0
        %652 = vmatprep.subr.mxu0 0.0
        %653 = vmatpush1.msra.mxu0 0.0
        %654 = vmatprep.subr.mxu0 0.0
        %655 = vmatpush1.msra.mxu0 0.0
        %656 = vmatprep.subr.mxu0 0.0
        %657 = vmatpush1.msra.mxu0 0.0
        %658 = vmatprep.mubr.f32.mxu0 0.0
        %659 = vmatmul.mubr.f32.gmra.mrb[0].mxu0 %v589
        %v660 = vpop.f32.mrb[0].mxu0
        %v661 = vadd.f32 0.0, %v660
        %v662 = vpop.f32.mrb[0].mxu0
        %663 = vmatprep.mubr.f32.mxu0 0.0
        %664 = vmatmul.mubr.f32.gmra.mrb[0].mxu0 %v592
        %v665 = vpop.f32.mrb[0].mxu0
        %v666 = vadd.f32 0.0, %v665
        %v667 = vpop.f32.mrb[0].mxu0
        %668 = vdwg.mxu0
        %v670 = vsel %vm321, %v583, 0
        %v673 = vsel %vm321, %v584, 0
        %675 = vmatprep.subr.mxu0 0.0
        %676 = vmatpush1.msra.mxu0 %v404
        %677 = vmatprep.subr.mxu0 0.0
        %678 = vmatpush1.msra.mxu0 %v406
        %679 = vmatprep.subr.mxu0 0.0
        %680 = vmatpush1.msra.mxu0 %v408
        %681 = vmatprep.subr.mxu0 0.0
        %682 = vmatpush1.msra.mxu0 %v410
        %683 = vmatprep.subr.mxu0 0.0
        %684 = vmatpush1.msra.mxu0 0.0
        %685 = vmatprep.subr.mxu0 0.0
        %686 = vmatpush1.msra.mxu0 0.0
        %687 = vmatprep.subr.mxu0 0.0
        %688 = vmatpush1.msra.mxu0 0.0
        %689 = vmatprep.subr.mxu0 0.0
        %690 = vmatpush1.msra.mxu0 0.0
        %691 = vmatprep.subr.mxu0 0.0
        %692 = vmatpush1.msra.mxu0 0.0
        %693 = vmatprep.subr.mxu0 0.0
        %694 = vmatpush1.msra.mxu0 0.0
        %695 = vmatprep.subr.mxu0 0.0
        %696 = vmatpush1.msra.mxu0 0.0
        %697 = vmatprep.subr.mxu0 0.0
        %698 = vmatpush1.msra.mxu0 0.0
        %699 = vmatprep.subr.mxu0 0.0
        %700 = vmatpush1.msra.mxu0 0.0
        %701 = vmatprep.subr.mxu0 0.0
        %702 = vmatpush1.msra.mxu0 0.0
        %703 = vmatprep.subr.mxu0 0.0
        %704 = vmatpush1.msra.mxu0 0.0
        %705 = vmatprep.subr.mxu0 0.0
        %706 = vmatpush1.msra.mxu0 0.0
        %707 = vmatprep.subr.mxu0 0.0
        %708 = vmatpush1.msra.mxu0 0.0
        %709 = vmatprep.subr.mxu0 0.0
        %710 = vmatpush1.msra.mxu0 0.0
        %711 = vmatprep.subr.mxu0 0.0
        %712 = vmatpush1.msra.mxu0 0.0
        %713 = vmatprep.subr.mxu0 0.0
        %714 = vmatpush1.msra.mxu0 0.0
        %715 = vmatprep.subr.mxu0 0.0
        %716 = vmatpush1.msra.mxu0 0.0
        %717 = vmatprep.subr.mxu0 0.0
        %718 = vmatpush1.msra.mxu0 0.0
        %719 = vmatprep.subr.mxu0 0.0
        %720 = vmatpush1.msra.mxu0 0.0
        %721 = vmatprep.subr.mxu0 0.0
        %722 = vmatpush1.msra.mxu0 0.0
        %723 = vmatprep.subr.mxu0 0.0
        %724 = vmatpush1.msra.mxu0 0.0
        %725 = vmatprep.subr.mxu0 0.0
        %726 = vmatpush1.msra.mxu0 0.0
        %727 = vmatprep.subr.mxu0 0.0
        %728 = vmatpush1.msra.mxu0 0.0
        %729 = vmatprep.subr.mxu0 0.0
        %730 = vmatpush1.msra.mxu0 0.0
        %731 = vmatprep.subr.mxu0 0.0
        %732 = vmatpush1.msra.mxu0 0.0
        %733 = vmatprep.subr.mxu0 0.0
        %734 = vmatpush1.msra.mxu0 0.0
        %735 = vmatprep.subr.mxu0 0.0
        %736 = vmatpush1.msra.mxu0 0.0
        %737 = vmatprep.subr.mxu0 0.0
        %738 = vmatpush1.msra.mxu0 0.0
        %739 = vmatprep.mubr.f32.mxu0 0.0
        %740 = vmatmul.mubr.f32.gmra.mrb[0].mxu0 %v670
        %v741 = vpop.f32.mrb[0].mxu0
        %v742 = vadd.f32 %v661, %v741
        %v743 = vpop.f32.mrb[0].mxu0
        %744 = vmatprep.mubr.f32.mxu0 0.0
        %745 = vmatmul.mubr.f32.gmra.mrb[0].mxu0 %v673
        %v746 = vpop.f32.mrb[0].mxu0
        %v747 = vadd.f32 %v666, %v746
        %v748 = vpop.f32.mrb[0].mxu0
        %749 = vdwg.mxu0
        %v750 = vlaneseq
        %v751 = vshrl.u32 %v750, 7
        %v752 = vsub.s32 0, %v751
        %v753 = vrot.slane %v580, %v752
        %755 = vbcast.lane.b32.xlu0 %v753, 256
        %v756 = vpop.permute.xlu0 %755
        %v757 = vlaneseq
        %v758 = vshrl.u32 %v757, 7
        %v759 = vsub.s32 1, %v758
        %v760 = vrot.slane %v580, %v759
        %762 = vbcast.lane.b32.xlu0 %v760, 256
        %v763 = vpop.permute.xlu0 %762
        %v764 = vlaneseq
        %v765 = vshrl.u32 %v764, 7
        %v766 = vsub.s32 2, %v765
        %v767 = vrot.slane %v580, %v766
        %769 = vbcast.lane.b32.xlu0 %v767, 256
        %v770 = vpop.permute.xlu0 %769
        %v771 = vlaneseq
        %v772 = vshrl.u32 %v771, 7
        %v773 = vsub.s32 3, %v772
        %v774 = vrot.slane %v580, %v773
        %776 = vbcast.lane.b32.xlu0 %v774, 256
        %v777 = vpop.permute.xlu0 %776
        %v778 = vlaneseq
        %v779 = vshrl.u32 %v778, 7
        %v780 = vsub.s32 4, %v779
        %v781 = vrot.slane %v580, %v780
        %783 = vbcast.lane.b32.xlu0 %v781, 256
        %v784 = vpop.permute.xlu0 %783
        %v785 = vlaneseq
        %v786 = vshrl.u32 %v785, 7
        %v787 = vsub.s32 5, %v786
        %v788 = vrot.slane %v580, %v787
        %790 = vbcast.lane.b32.xlu0 %v788, 256
        %v791 = vpop.permute.xlu0 %790
        %v792 = vlaneseq
        %v793 = vshrl.u32 %v792, 7
        %v794 = vsub.s32 6, %v793
        %v795 = vrot.slane %v580, %v794
        %797 = vbcast.lane.b32.xlu0 %v795, 256
        %v798 = vpop.permute.xlu0 %797
        %v799 = vlaneseq
        %v800 = vshrl.u32 %v799, 7
        %v801 = vsub.s32 7, %v800
        %v802 = vrot.slane %v580, %v801
        %804 = vbcast.lane.b32.xlu0 %v802, 256
        %v805 = vpop.permute.xlu0 %804
        %v806 = vlaneseq
        %v807 = vshrl.u32 %v806, 7
        %v808 = vsub.s32 0, %v807
        %v809 = vrot.slane %v581, %v808
        %811 = vbcast.lane.b32.xlu0 %v809, 256
        %v812 = vpop.permute.xlu0 %811
        %v813 = vlaneseq
        %v814 = vshrl.u32 %v813, 7
        %v815 = vsub.s32 1, %v814
        %v816 = vrot.slane %v581, %v815
        %818 = vbcast.lane.b32.xlu0 %v816, 256
        %v819 = vpop.permute.xlu0 %818
        %v820 = vlaneseq
        %v821 = vshrl.u32 %v820, 7
        %v822 = vsub.s32 2, %v821
        %v823 = vrot.slane %v581, %v822
        %825 = vbcast.lane.b32.xlu0 %v823, 256
        %v826 = vpop.permute.xlu0 %825
        %v827 = vlaneseq
        %v828 = vshrl.u32 %v827, 7
        %v829 = vsub.s32 3, %v828
        %v830 = vrot.slane %v581, %v829
        %832 = vbcast.lane.b32.xlu0 %v830, 256
        %v833 = vpop.permute.xlu0 %832
        %v834 = vlaneseq
        %v835 = vshrl.u32 %v834, 7
        %v836 = vsub.s32 4, %v835
        %v837 = vrot.slane %v581, %v836
        %839 = vbcast.lane.b32.xlu0 %v837, 256
        %v840 = vpop.permute.xlu0 %839
        %v841 = vlaneseq
        %v842 = vshrl.u32 %v841, 7
        %v843 = vsub.s32 5, %v842
        %v844 = vrot.slane %v581, %v843
        %846 = vbcast.lane.b32.xlu0 %v844, 256
        %v847 = vpop.permute.xlu0 %846
        %v848 = vlaneseq
        %v849 = vshrl.u32 %v848, 7
        %v850 = vsub.s32 6, %v849
        %v851 = vrot.slane %v581, %v850
        %853 = vbcast.lane.b32.xlu0 %v851, 256
        %v854 = vpop.permute.xlu0 %853
        %v855 = vlaneseq
        %v856 = vshrl.u32 %v855, 7
        %v857 = vsub.s32 7, %v856
        %v858 = vrot.slane %v581, %v857
        %860 = vbcast.lane.b32.xlu0 %v858, 256
        %v861 = vpop.permute.xlu0 %860
        %v862 = vlaneseq
        %v863 = vshrl.u32 %v862, 7
        %v864 = vsub.s32 0, %v863
        %v865 = vrot.slane %v742, %v864
        %867 = vbcast.lane.b32.xlu0 %v865, 256
        %v868 = vpop.permute.xlu0 %867
        %v869 = vlaneseq
        %v870 = vshrl.u32 %v869, 7
        %v871 = vsub.s32 1, %v870
        %v872 = vrot.slane %v742, %v871
        %874 = vbcast.lane.b32.xlu0 %v872, 256
        %v875 = vpop.permute.xlu0 %874
        %v876 = vlaneseq
        %v877 = vshrl.u32 %v876, 7
        %v878 = vsub.s32 2, %v877
        %v879 = vrot.slane %v742, %v878
        %881 = vbcast.lane.b32.xlu0 %v879, 256
        %v882 = vpop.permute.xlu0 %881
        %v883 = vlaneseq
        %v884 = vshrl.u32 %v883, 7
        %v885 = vsub.s32 3, %v884
        %v886 = vrot.slane %v742, %v885
        %888 = vbcast.lane.b32.xlu0 %v886, 256
        %v889 = vpop.permute.xlu0 %888
        %v890 = vlaneseq
        %v891 = vshrl.u32 %v890, 7
        %v892 = vsub.s32 4, %v891
        %v893 = vrot.slane %v742, %v892
        %895 = vbcast.lane.b32.xlu0 %v893, 256
        %v896 = vpop.permute.xlu0 %895
        %v897 = vlaneseq
        %v898 = vshrl.u32 %v897, 7
        %v899 = vsub.s32 5, %v898
        %v900 = vrot.slane %v742, %v899
        %902 = vbcast.lane.b32.xlu0 %v900, 256
        %v903 = vpop.permute.xlu0 %902
        %v904 = vlaneseq
        %v905 = vshrl.u32 %v904, 7
        %v906 = vsub.s32 6, %v905
        %v907 = vrot.slane %v742, %v906
        %909 = vbcast.lane.b32.xlu0 %v907, 256
        %v910 = vpop.permute.xlu0 %909
        %v911 = vlaneseq
        %v912 = vshrl.u32 %v911, 7
        %v913 = vsub.s32 7, %v912
        %v914 = vrot.slane %v742, %v913
        %916 = vbcast.lane.b32.xlu0 %v914, 256
        %v917 = vpop.permute.xlu0 %916
        %v918 = vlaneseq
        %v919 = vshrl.u32 %v918, 7
        %v920 = vsub.s32 0, %v919
        %v921 = vrot.slane %v747, %v920
        %923 = vbcast.lane.b32.xlu0 %v921, 256
        %v924 = vpop.permute.xlu0 %923
        %v925 = vlaneseq
        %v926 = vshrl.u32 %v925, 7
        %v927 = vsub.s32 1, %v926
        %v928 = vrot.slane %v747, %v927
        %930 = vbcast.lane.b32.xlu0 %v928, 256
        %v931 = vpop.permute.xlu0 %930
        %v932 = vlaneseq
        %v933 = vshrl.u32 %v932, 7
        %v934 = vsub.s32 2, %v933
        %v935 = vrot.slane %v747, %v934
        %937 = vbcast.lane.b32.xlu0 %v935, 256
        %v938 = vpop.permute.xlu0 %937
        %v939 = vlaneseq
        %v940 = vshrl.u32 %v939, 7
        %v941 = vsub.s32 3, %v940
        %v942 = vrot.slane %v747, %v941
        %944 = vbcast.lane.b32.xlu0 %v942, 256
        %v945 = vpop.permute.xlu0 %944
        %v946 = vlaneseq
        %v947 = vshrl.u32 %v946, 7
        %v948 = vsub.s32 4, %v947
        %v949 = vrot.slane %v747, %v948
        %951 = vbcast.lane.b32.xlu0 %v949, 256
        %v952 = vpop.permute.xlu0 %951
        %v953 = vlaneseq
        %v954 = vshrl.u32 %v953, 7
        %v955 = vsub.s32 5, %v954
        %v956 = vrot.slane %v747, %v955
        %958 = vbcast.lane.b32.xlu0 %v956, 256
        %v959 = vpop.permute.xlu0 %958
        %v960 = vlaneseq
        %v961 = vshrl.u32 %v960, 7
        %v962 = vsub.s32 6, %v961
        %v963 = vrot.slane %v747, %v962
        %965 = vbcast.lane.b32.xlu0 %v963, 256
        %v966 = vpop.permute.xlu0 %965
        %v967 = vlaneseq
        %v968 = vshrl.u32 %v967, 7
        %v969 = vsub.s32 7, %v968
        %v970 = vrot.slane %v747, %v969
        %972 = vbcast.lane.b32.xlu0 %v970, 256
        %v973 = vpop.permute.xlu0 %972
        %vm974 = vcmask 7168
        %v975 = vsel %vm974, %v756, %v868
        %v976 = vsel %vm974, %v763, %v875
        %v977 = vsel %vm974, %v770, %v882
        %v978 = vsel %vm974, %v777, %v889
        %v979 = vsel %vm974, %v784, %v896
        %v980 = vsel %vm974, %v791, %v903
        %v981 = vsel %vm974, %v798, %v910
        %v982 = vsel %vm974, %v805, %v917
        %v983 = vsel %vm974, %v812, %v924
        %v984 = vsel %vm974, %v819, %v931
        %v985 = vsel %vm974, %v826, %v938
        %v986 = vsel %vm974, %v833, %v945
        %v987 = vsel %vm974, %v840, %v952
        %v988 = vsel %vm974, %v847, %v959
        %v989 = vsel %vm974, %v854, %v966
        %v990 = vsel %vm974, %v861, %v973
        %v991 = vcombine.low %v975, %v977
        %v992 = vcombine.high %v975, %v977
        %v994 = vunpack.c.l.s4 1983009808
        %v995 = vunpack.c.0.s8 %v994
        %v996 = vlaneseq
        %v997 = vshrl.u32 %v996, 7
        %v998 = vsub.s32 %v995, %v997
        %v999 = vrot.slane %v991, %v998
        %v1001 = vunpack.c.l.s4 1983009808
        %v1002 = vunpack.c.0.s8 %v1001
        %v1003 = vlaneseq
        %v1004 = vshrl.u32 %v1003, 7
        %v1005 = vsub.s32 %v1002, %v1004
        %v1006 = vrot.slane %v992, %v1005
        %v1007 = vcombine.low %v976, %v978
        %v1008 = vcombine.high %v976, %v978
        %v1010 = vunpack.c.l.s4 1983009808
        %v1011 = vunpack.c.0.s8 %v1010
        %v1012 = vlaneseq
        %v1013 = vshrl.u32 %v1012, 7
        %v1014 = vsub.s32 %v1011, %v1013
        %v1015 = vrot.slane %v1007, %v1014
        %v1017 = vunpack.c.l.s4 1983009808
        %v1018 = vunpack.c.0.s8 %v1017
        %v1019 = vlaneseq
        %v1020 = vshrl.u32 %v1019, 7
        %v1021 = vsub.s32 %v1018, %v1020
        %v1022 = vrot.slane %v1008, %v1021
        %v1023 = vcombine.low %v979, %v981
        %v1024 = vcombine.high %v979, %v981
        %v1026 = vunpack.c.l.s4 1983009808
        %v1027 = vunpack.c.0.s8 %v1026
        %v1028 = vlaneseq
        %v1029 = vshrl.u32 %v1028, 7
        %v1030 = vsub.s32 %v1027, %v1029
        %v1031 = vrot.slane %v1023, %v1030
        %v1033 = vunpack.c.l.s4 1983009808
        %v1034 = vunpack.c.0.s8 %v1033
        %v1035 = vlaneseq
        %v1036 = vshrl.u32 %v1035, 7
        %v1037 = vsub.s32 %v1034, %v1036
        %v1038 = vrot.slane %v1024, %v1037
        %v1039 = vcombine.low %v980, %v982
        %v1040 = vcombine.high %v980, %v982
        %v1042 = vunpack.c.l.s4 1983009808
        %v1043 = vunpack.c.0.s8 %v1042
        %v1044 = vlaneseq
        %v1045 = vshrl.u32 %v1044, 7
        %v1046 = vsub.s32 %v1043, %v1045
        %v1047 = vrot.slane %v1039, %v1046
        %v1049 = vunpack.c.l.s4 1983009808
        %v1050 = vunpack.c.0.s8 %v1049
        %v1051 = vlaneseq
        %v1052 = vshrl.u32 %v1051, 7
        %v1053 = vsub.s32 %v1050, %v1052
        %v1054 = vrot.slane %v1040, %v1053
        %v1055 = vcombine.low %v999, %v1015
        %v1056 = vcombine.high %v999, %v1015
        %v1058 = vunpack.c.l.s4 1934713408
        %v1059 = vunpack.c.0.s8 %v1058
        %v1060 = vlaneseq
        %v1061 = vshrl.u32 %v1060, 7
        %v1062 = vsub.s32 %v1059, %v1061
        %v1063 = vrot.slane %v1055, %v1062
        %v1065 = vunpack.c.l.s4 1934713408
        %v1066 = vunpack.c.0.s8 %v1065
        %v1067 = vlaneseq
        %v1068 = vshrl.u32 %v1067, 7
        %v1069 = vsub.s32 %v1066, %v1068
        %v1070 = vrot.slane %v1056, %v1069
        %v1071 = vcombine.low %v1006, %v1022
        %v1072 = vcombine.high %v1006, %v1022
        %v1074 = vunpack.c.l.s4 1934713408
        %v1075 = vunpack.c.0.s8 %v1074
        %v1076 = vlaneseq
        %v1077 = vshrl.u32 %v1076, 7
        %v1078 = vsub.s32 %v1075, %v1077
        %v1079 = vrot.slane %v1071, %v1078
        %v1081 = vunpack.c.l.s4 1934713408
        %v1082 = vunpack.c.0.s8 %v1081
        %v1083 = vlaneseq
        %v1084 = vshrl.u32 %v1083, 7
        %v1085 = vsub.s32 %v1082, %v1084
        %v1086 = vrot.slane %v1072, %v1085
        %v1087 = vcombine.low %v1031, %v1047
        %v1088 = vcombine.high %v1031, %v1047
        %v1090 = vunpack.c.l.s4 1934713408
        %v1091 = vunpack.c.0.s8 %v1090
        %v1092 = vlaneseq
        %v1093 = vshrl.u32 %v1092, 7
        %v1094 = vsub.s32 %v1091, %v1093
        %v1095 = vrot.slane %v1087, %v1094
        %v1097 = vunpack.c.l.s4 1934713408
        %v1098 = vunpack.c.0.s8 %v1097
        %v1099 = vlaneseq
        %v1100 = vshrl.u32 %v1099, 7
        %v1101 = vsub.s32 %v1098, %v1100
        %v1102 = vrot.slane %v1088, %v1101
        %v1103 = vcombine.low %v1038, %v1054
        %v1104 = vcombine.high %v1038, %v1054
        %v1106 = vunpack.c.l.s4 1934713408
        %v1107 = vunpack.c.0.s8 %v1106
        %v1108 = vlaneseq
        %v1109 = vshrl.u32 %v1108, 7
        %v1110 = vsub.s32 %v1107, %v1109
        %v1111 = vrot.slane %v1103, %v1110
        %v1113 = vunpack.c.l.s4 1934713408
        %v1114 = vunpack.c.0.s8 %v1113
        %v1115 = vlaneseq
        %v1116 = vshrl.u32 %v1115, 7
        %v1117 = vsub.s32 %v1114, %v1116
        %v1118 = vrot.slane %v1104, %v1117
        %v1119 = vcombine.low %v1063, %v1095
        %v1120 = vcombine.high %v1063, %v1095
        %v1121 = vcombine.low %v1070, %v1102
        %v1122 = vcombine.high %v1070, %v1102
        %v1123 = vcombine.low %v1079, %v1111
        %v1124 = vcombine.high %v1079, %v1111
        %v1125 = vcombine.low %v1086, %v1118
        %v1126 = vcombine.high %v1086, %v1118
        %v1127 = vcombine.low %v983, %v985
        %v1128 = vcombine.high %v983, %v985
        %v1130 = vunpack.c.l.s4 1983009808
        %v1131 = vunpack.c.0.s8 %v1130
        %v1132 = vlaneseq
        %v1133 = vshrl.u32 %v1132, 7
        %v1134 = vsub.s32 %v1131, %v1133
        %v1135 = vrot.slane %v1127, %v1134
        %v1137 = vunpack.c.l.s4 1983009808
        %v1138 = vunpack.c.0.s8 %v1137
        %v1139 = vlaneseq
        %v1140 = vshrl.u32 %v1139, 7
        %v1141 = vsub.s32 %v1138, %v1140
        %v1142 = vrot.slane %v1128, %v1141
        %v1143 = vcombine.low %v984, %v986
        %v1144 = vcombine.high %v984, %v986
        %v1146 = vunpack.c.l.s4 1983009808
        %v1147 = vunpack.c.0.s8 %v1146
        %v1148 = vlaneseq
        %v1149 = vshrl.u32 %v1148, 7
        %v1150 = vsub.s32 %v1147, %v1149
        %v1151 = vrot.slane %v1143, %v1150
        %v1153 = vunpack.c.l.s4 1983009808
        %v1154 = vunpack.c.0.s8 %v1153
        %v1155 = vlaneseq
        %v1156 = vshrl.u32 %v1155, 7
        %v1157 = vsub.s32 %v1154, %v1156
        %v1158 = vrot.slane %v1144, %v1157
        %v1159 = vcombine.low %v987, %v989
        %v1160 = vcombine.high %v987, %v989
        %v1162 = vunpack.c.l.s4 1983009808
        %v1163 = vunpack.c.0.s8 %v1162
        %v1164 = vlaneseq
        %v1165 = vshrl.u32 %v1164, 7
        %v1166 = vsub.s32 %v1163, %v1165
        %v1167 = vrot.slane %v1159, %v1166
        %v1169 = vunpack.c.l.s4 1983009808
        %v1170 = vunpack.c.0.s8 %v1169
        %v1171 = vlaneseq
        %v1172 = vshrl.u32 %v1171, 7
        %v1173 = vsub.s32 %v1170, %v1172
        %v1174 = vrot.slane %v1160, %v1173
        %v1175 = vcombine.low %v988, %v990
        %v1176 = vcombine.high %v988, %v990
        %v1178 = vunpack.c.l.s4 1983009808
        %v1179 = vunpack.c.0.s8 %v1178
        %v1180 = vlaneseq
        %v1181 = vshrl.u32 %v1180, 7
        %v1182 = vsub.s32 %v1179, %v1181
        %v1183 = vrot.slane %v1175, %v1182
        %v1185 = vunpack.c.l.s4 1983009808
        %v1186 = vunpack.c.0.s8 %v1185
        %v1187 = vlaneseq
        %v1188 = vshrl.u32 %v1187, 7
        %v1189 = vsub.s32 %v1186, %v1188
        %v1190 = vrot.slane %v1176, %v1189
        %v1191 = vcombine.low %v1135, %v1151
        %v1192 = vcombine.high %v1135, %v1151
        %v1194 = vunpack.c.l.s4 1934713408
        %v1195 = vunpack.c.0.s8 %v1194
        %v1196 = vlaneseq
        %v1197 = vshrl.u32 %v1196, 7
        %v1198 = vsub.s32 %v1195, %v1197
        %v1199 = vrot.slane %v1191, %v1198
        %v1201 = vunpack.c.l.s4 1934713408
        %v1202 = vunpack.c.0.s8 %v1201
        %v1203 = vlaneseq
        %v1204 = vshrl.u32 %v1203, 7
        %v1205 = vsub.s32 %v1202, %v1204
        %v1206 = vrot.slane %v1192, %v1205
        %v1207 = vcombine.low %v1142, %v1158
        %v1208 = vcombine.high %v1142, %v1158
        %v1210 = vunpack.c.l.s4 1934713408
        %v1211 = vunpack.c.0.s8 %v1210
        %v1212 = vlaneseq
        %v1213 = vshrl.u32 %v1212, 7
        %v1214 = vsub.s32 %v1211, %v1213
        %v1215 = vrot.slane %v1207, %v1214
        %v1217 = vunpack.c.l.s4 1934713408
        %v1218 = vunpack.c.0.s8 %v1217
        %v1219 = vlaneseq
        %v1220 = vshrl.u32 %v1219, 7
        %v1221 = vsub.s32 %v1218, %v1220
        %v1222 = vrot.slane %v1208, %v1221
        %v1223 = vcombine.low %v1167, %v1183
        %v1224 = vcombine.high %v1167, %v1183
        %v1226 = vunpack.c.l.s4 1934713408
        %v1227 = vunpack.c.0.s8 %v1226
        %v1228 = vlaneseq
        %v1229 = vshrl.u32 %v1228, 7
        %v1230 = vsub.s32 %v1227, %v1229
        %v1231 = vrot.slane %v1223, %v1230
        %v1233 = vunpack.c.l.s4 1934713408
        %v1234 = vunpack.c.0.s8 %v1233
        %v1235 = vlaneseq
        %v1236 = vshrl.u32 %v1235, 7
        %v1237 = vsub.s32 %v1234, %v1236
        %v1238 = vrot.slane %v1224, %v1237
        %v1239 = vcombine.low %v1174, %v1190
        %v1240 = vcombine.high %v1174, %v1190
        %v1242 = vunpack.c.l.s4 1934713408
        %v1243 = vunpack.c.0.s8 %v1242
        %v1244 = vlaneseq
        %v1245 = vshrl.u32 %v1244, 7
        %v1246 = vsub.s32 %v1243, %v1245
        %v1247 = vrot.slane %v1239, %v1246
        %v1249 = vunpack.c.l.s4 1934713408
        %v1250 = vunpack.c.0.s8 %v1249
        %v1251 = vlaneseq
        %v1252 = vshrl.u32 %v1251, 7
        %v1253 = vsub.s32 %v1250, %v1252
        %v1254 = vrot.slane %v1240, %v1253
        %v1255 = vcombine.low %v1199, %v1231
        %v1256 = vcombine.high %v1199, %v1231
        %v1257 = vcombine.low %v1206, %v1238
        %v1258 = vcombine.high %v1206, %v1238
        %v1259 = vcombine.low %v1215, %v1247
        %v1260 = vcombine.high %v1215, %v1247
        %v1261 = vcombine.low %v1222, %v1254
        %v1262 = vcombine.high %v1222, %v1254
        %1265 = vrot.lane.b32.xlu0 %v1120, 2
        %v1266 = vpop.permute.xlu0 %1265
        %1267 = vrot.lane.b32.xlu0 %v1256, 2
        %v1268 = vpop.permute.xlu0 %1267
        %1273 = vrot.lane.b32.xlu0 %v1121, 4
        %v1274 = vpop.permute.xlu0 %1273
        %1275 = vrot.lane.b32.xlu0 %v1257, 4
        %v1276 = vpop.permute.xlu0 %1275
        %1281 = vrot.lane.b32.xlu0 %v1122, 6
        %v1282 = vpop.permute.xlu0 %1281
        %1283 = vrot.lane.b32.xlu0 %v1258, 6
        %v1284 = vpop.permute.xlu0 %1283
        %1289 = vrot.lane.b32.xlu0 %v1123, 8
        %v1290 = vpop.permute.xlu0 %1289
        %1291 = vrot.lane.b32.xlu0 %v1259, 8
        %v1292 = vpop.permute.xlu0 %1291
        %1297 = vrot.lane.b32.xlu0 %v1124, 10
        %v1298 = vpop.permute.xlu0 %1297
        %1299 = vrot.lane.b32.xlu0 %v1260, 10
        %v1300 = vpop.permute.xlu0 %1299
        %1305 = vrot.lane.b32.xlu0 %v1125, 12
        %v1306 = vpop.permute.xlu0 %1305
        %1307 = vrot.lane.b32.xlu0 %v1261, 12
        %v1308 = vpop.permute.xlu0 %1307
        %1313 = vrot.lane.b32.xlu0 %v1126, 14
        %v1314 = vpop.permute.xlu0 %1313
        %1315 = vrot.lane.b32.xlu0 %v1262, 14
        %v1316 = vpop.permute.xlu0 %1315
        %vm1319 = vcmask 15360
        %v1320 = vsel %vm1319, %v1119, %v1266
        %v1321 = vsel %vm1319, %v1255, %v1268
        %vm1322 = vcmask 31744
        %v1323 = vsel %vm1322, %v1320, %v1274
        %v1324 = vsel %vm1322, %v1321, %v1276
        %vm1325 = vcmask 48128
        %v1326 = vsel %vm1325, %v1323, %v1282
        %v1327 = vsel %vm1325, %v1324, %v1284
        %vm1328 = vcmask 64512
        %v1329 = vsel %vm1328, %v1326, %v1290
        %v1330 = vsel %vm1328, %v1327, %v1292
        %vm1331 = vcmask 80896
        %v1332 = vsel %vm1331, %v1329, %v1298
        %v1333 = vsel %vm1331, %v1330, %v1300
        %vm1334 = vcmask 97280
        %v1335 = vsel %vm1334, %v1332, %v1306
        %v1336 = vsel %vm1334, %v1333, %v1308
        %vm1337 = vcmask 113664
        %v1338 = vsel %vm1337, %v1335, %v1314
        %v1339 = vsel %vm1337, %v1336, %v1316
        %v1340 = vld [vmem:[%s2] sm:$0xff]
        %v1341 = vld [vmem:[%s2 + $0x8] sm:$0xff]
        %1343 = vset.pattern.permute.xlu0 0
        %1344 = vperm.xlu0 %1343, %v1340
        %v1345 = vpop.permute.xlu0 %1344
        %1348 = vset.pattern.permute.xlu0 0
        %1349 = vperm.xlu0 %1348, %v1341
        %v1350 = vpop.permute.xlu0 %1349
        %v1352 = vadd.f32 %v1338, %v1345
        %v1353 = vadd.f32 %v1339, %v1350
        %v1354 = vlaneseq
        %v1355 = vand.u32 %v1354, 127
        %s1356 = smul.u32 %s25, 16
        %v1357 = vstv %s1356
        %v1358 = vadd.s32 %v1355, %v1357
        %vm1359 = vcmp.lt.s32.totalorder %v1358, 16
        %v1360 = vsel %vm1359, 1, 0
        %v1361 = vcvt.s32.f32 %v1360
        %v1362 = vmul.f32 %v1352, %v1361
        %v1363 = vmul.f32 %v1353, %v1361
        %vm1364 = vcmask 130048
        %v1365 = vsel %vm1364, %v1362, 0.0
        %1366 = vadd.xlane.f32.xlu0 %v1365
        %v1367 = vpop.xlane.xlu0 %1366
        %v1368 = vsel %vm1364, %v1363, 0.0
        %1369 = vadd.xlane.f32.xlu0 %v1368
        %v1370 = vpop.xlane.xlu0 %1369
        %1371 = vst.msk [vmem:[%s286] sm:$0xff] %vm974, %v1367
        %1372 = vst.msk [vmem:[%s286 + $0x8] sm:$0xff] %vm974, %v1370
        %v1373 = vmul.f32 %v1362, %v1352
        %v1374 = vmul.f32 %v1363, %v1353
        %v1375 = vsel %vm1364, %v1373, 0.0
        %1376 = vadd.xlane.f32.xlu0 %v1375
        %v1377 = vpop.xlane.xlu0 %1376
        %v1378 = vsel %vm1364, %v1374, 0.0
        %1379 = vadd.xlane.f32.xlu0 %v1378
        %v1380 = vpop.xlane.xlu0 %1379
        %1381 = vst.msk [vmem:[%s295] sm:$0xff] %vm974, %v1377
        %1382 = vst.msk [vmem:[%s295 + $0x8] sm:$0xff] %vm974, %v1380
        %1383 = vst.msk [vmem:[%s246] sm:$0xff] %vm1364, %v1352
        %1384 = vst.msk [vmem:[%s246 + $0x8] sm:$0xff] %vm1364, %v1353
        %s1385 = sand.u32 %s112, 1
        %s1386 = scalar_lea.sflag [#allocation3], %s1385
        %s1387 = sand.u32 %s112, 1
        %s1388 = smul.addr %s1387, 16
        %s1389 = scalar_lea.vmem [#allocation2], %s1388
        %p1390 = scmp.lt.s32.totalorder %s24, 1
        %s1391 = scalar_select %p1390, %s24, 1
        %p1392 = scmp.lt.s32.totalorder %s25, 0
        %s1393 = scalar_select %p1392, %s25, 0
        %s1394 = smul.addr %s1393, 2
        %s1395 = smul.addr %s1391, 2
        %s1396 = sadd.s32 %s1394, %s1395
        %s1397 = smul.addr %s1396, 8
        %s1398 = scalar_lea.vmem %s4, %s1397
        %p1399 = scmp.lt.s32.totalorder %s24, 1
        %s1400 = scalar_select %p1399, %s24, 1
        %p1401 = scmp.lt.s32.totalorder %s25, 0
        %s1402 = scalar_select %p1401, %s25, 0
        %s1403 = smul.addr %s1402, 2
        %s1404 = smul.addr %s1400, 2
        %s1405 = sadd.s32 %s1403, %s1404
        %s1406 = smul.addr %s1405, 8
        %s1407 = scalar_lea.vmem %s5, %s1406
        // Predicated region
        $region33: #{tpu_custom_call.1} parent=31 // pred_check
          %p1408 = pneg %p122
        $region34: #{tpu_custom_call.1} parent=31 // pred_check_branch
          %1410 = sbr.rel (%p1408) target = $region36
        $region35: #{tpu_custom_call.1} parent=31 // pred_region
          %s1412 = ssub.s32 256, 256
          %1413 = vsyncadd %s1386, %s1412
          %s1414 = smul.addr %s24, 2
          %s1415 = sadd.s32 %s25, %s1414
          %s1416 = smul.addr %s1415, 128
          %s1417 = scalar_lea.hbm %s3, %s1416
          %s1418 = sshll.u32 %s1389, 4
          %s1419 = int_to_ptr.vmem [resolvable:$true] %s1418
          %1424 = dma.vmem_to_hbm [thread:$0]  %s1419, 256, %s1417, %s1386, 128, 128, 8
        $region36: #{tpu_custom_call.1} parent=31 // pred_fallthru
          _
        // Predicated region
        $region37: #{tpu_custom_call.1} parent=31 // pred_check
          %p1425 = pneg %p150
        $region38: #{tpu_custom_call.1} parent=31 // pred_check_branch
          %1427 = sbr.rel (%p1425) target = $region40
        $region39: #{tpu_custom_call.1} parent=31 // pred_region
          _
        $region40: #{tpu_custom_call.1} parent=31 // pred_fallthru
          _
        // Predicated region
        $region41: #{tpu_custom_call.1} parent=31 // pred_check
          %p1428 = pneg %p178
        $region42: #{tpu_custom_call.1} parent=31 // pred_check_branch
          %1430 = sbr.rel (%p1428) target = $region44
        $region43: #{tpu_custom_call.1} parent=31 // pred_region
          _
        $region44: #{tpu_custom_call.1} parent=31 // pred_fallthru
          _
      $region32: #{tpu_custom_call.1} parent=5 // pred_fallthru
        _
      %p1431 = scmp.le.s32.totalorder 2, %s15
      // Predicated region
      $region45: #{tpu_custom_call.1} parent=5 // pred_check
        %p1432 = pneg %p1431
      $region46: #{tpu_custom_call.1} parent=5 // pred_check_branch
        %1434 = sbr.rel (%p1432) target = $region48
      $region47: #{tpu_custom_call.1} parent=5 // pred_region
        %s1435 = ssub.s32 %s15, 2
        // Predicated region
        $region49: #{tpu_custom_call.1} parent=47 // pred_check
          %p1436 = pneg %p128
        $region50: #{tpu_custom_call.1} parent=47 // pred_check_branch
          %1438 = sbr.rel (%p1436) target = $region52
        $region51: #{tpu_custom_call.1} parent=47 // pred_region
          %s1439 = sand.u32 %s113, 1
          %s1440 = scalar_lea.sflag [#allocation3], %s1439
          %s1441 = sand.u32 %s113, 1
          %s1442 = smul.addr %s1441, 16
          %s1443 = scalar_lea.vmem [#allocation2], %s1442
          %1444 = dma.done %s1440, 256
        $region52: #{tpu_custom_call.1} parent=47 // pred_fallthru
          _
        // Predicated region
        $region53: #{tpu_custom_call.1} parent=47 // pred_check
          %p1445 = pneg %p156
        $region54: #{tpu_custom_call.1} parent=47 // pred_check_branch
          %1447 = sbr.rel (%p1445) target = $region56
        $region55: #{tpu_custom_call.1} parent=47 // pred_region
          %p1448 = scmp.lt.s32.totalorder %s26, 1
          %s1449 = scalar_select %p1448, %s26, 1
          %p1450 = scmp.lt.s32.totalorder %s27, 0
          %s1451 = scalar_select %p1450, %s27, 0
          %s1452 = smul.addr %s1451, 2
          %s1453 = smul.addr %s1449, 2
          %s1454 = sadd.s32 %s1452, %s1453
          %s1455 = smul.addr %s1454, 8
          %s1456 = scalar_lea.vmem %s4, %s1455
        $region56: #{tpu_custom_call.1} parent=47 // pred_fallthru
          _
        // Predicated region
        $region57: #{tpu_custom_call.1} parent=47 // pred_check
          %p1457 = pneg %p184
        $region58: #{tpu_custom_call.1} parent=47 // pred_check_branch
          %1459 = sbr.rel (%p1457) target = $region60
        $region59: #{tpu_custom_call.1} parent=47 // pred_region
          %p1460 = scmp.lt.s32.totalorder %s26, 1
          %s1461 = scalar_select %p1460, %s26, 1
          %p1462 = scmp.lt.s32.totalorder %s27, 0
          %s1463 = scalar_select %p1462, %s27, 0
          %s1464 = smul.addr %s1463, 2
          %s1465 = smul.addr %s1461, 2
          %s1466 = sadd.s32 %s1464, %s1465
          %s1467 = smul.addr %s1466, 8
          %s1468 = scalar_lea.vmem %s5, %s1467
        $region60: #{tpu_custom_call.1} parent=47 // pred_fallthru
          _
      $region48: #{tpu_custom_call.1} parent=5 // pred_fallthru
        _
    $region6: #{tpu_custom_call.1} parent=1 // loop_footer
      %s19 = sadd.s32 1, %s15
    $region7: #{tpu_custom_call.1} parent=1 // loop_footer_branch
      %14 = sbr.rel target = $region3
    $region8: #{tpu_custom_call.1} parent=1 // loop_exit
      _
    %1469 = vsyncpa [#allocation3], 1
    %s1470 = scalar_lea.sflag [#allocation3], 1
    %1471 = vsyncpa %s1470, 1

</llo_original>
